<compile_context>
chip_gen: v6e
topology: v6e:2x2x1
jax: 0.10.0
libtpu: 0.0.40
codegen_flags: <defaults>
</compile_context>

<pallas_src>
import numpy as np
import jax
import jax.numpy as jnp
from jax.experimental import pallas as pl
from jax.experimental.pallas import tpu as pltpu


# ----------------------------------------------------------------------------
# Host-side parameter setup (glue): PyTorch-equivalent bicubic interpolation
# matrices (a = -0.75, align_corners=True, border-replicated taps).
# ----------------------------------------------------------------------------
def _cubic_weights(in_size, out_size, a=-0.75, align_corners=True):
    W = np.zeros((out_size, in_size), dtype=np.float64)

    def c1(x):  # |x| <= 1
        return ((a + 2.0) * x - (a + 3.0)) * x * x + 1.0

    def c2(x):  # 1 < |x| < 2
        return ((a * x - 5.0 * a) * x + 8.0 * a) * x - 4.0 * a

    for i in range(out_size):
        if align_corners and out_size > 1:
            src = i * (in_size - 1) / (out_size - 1)
        else:
            src = (i + 0.5) * in_size / out_size - 0.5
        x0 = int(np.floor(src))
        t = src - x0
        coeffs = (c2(t + 1.0), c1(t), c1(1.0 - t), c2(2.0 - t))
        for k, w in enumerate(coeffs):
            idx = min(max(x0 - 1 + k, 0), in_size - 1)
            W[i, idx] += w
    return W.astype(np.float32)


def build_params(key, C, Hi, Wi, image_size, D, E):
    """Pure host-side parameter setup (glue)."""
    Ho = Wo = image_size
    mean = np.array([0.48145466, 0.4578275, 0.40821073], np.float32)
    std = np.array([0.26862954, 0.26130258, 0.27577711], np.float32)
    assert C == mean.shape[0], "CLIP normalization assumes 3 channels"

    # bicubic matrices stay f32 (parity with torch fp32 bicubic).
    wh = _cubic_weights(Hi, Ho)                                   # (Ho, Hi)
    wwt = _cubic_weights(Wi, Wo).T                                # (Wi, Wo)
    # fold 0.5*(1+x): resize(0.5 + 0.5*x) = x @ (0.5*resize_w) ... + resize(0.5*ones)
    wwt_half = 0.5 * wwt
    offs = wh @ (0.5 * np.ones((Hi, Wi), np.float32)) @ wwt       # (Ho, Wo)
    offs_cl = np.tile(offs, (1, C)).astype(np.float32)            # (Ho, C*Wo) channels-on-lanes

    inv_std = 1.0 / std
    nbias = -mean * inv_std

    ks = iter(jax.random.split(key, 3))
    w1 = np.asarray(jax.random.normal(next(ks), (C * Wo, D), jnp.float32)) * 0.02
    b1 = np.zeros((1, D), np.float32)
    pos = np.asarray(jax.random.normal(next(ks), (Ho, D), jnp.float32)) * 0.02
    w2 = np.asarray(jax.random.normal(next(ks), (D, E), jnp.float32)) * 0.02

    # Fold (y - mean)/std (a per-channel affine applied before a linear layer)
    # into the embed weights/bias: rows of w1 for channel c scale by 1/std[c];
    # the -mean/std bias becomes a constant added to the embed bias.
    scale_rows = np.repeat(inv_std, Wo)[:, None].astype(np.float32)     # (C*Wo, 1)
    w1_eff = w1 * scale_rows
    bias_fold = np.zeros((1, D), np.float32)
    for c in range(C):
        bias_fold += nbias[c] * w1[c * Wo:(c + 1) * Wo].sum(axis=0, keepdims=True)
    posb = (pos + b1 + bias_fold).astype(np.float32)                    # (Ho, D)

    return dict(
        image_size=image_size, D=D, E=E,
        wwt_half=jnp.asarray(wwt_half, jnp.float32),     # (Wi, Wo)     f32
        wh=jnp.asarray(wh, jnp.float32),                 # (Ho, Hi)     f32
        offs=jnp.asarray(offs_cl, jnp.float32),          # (Ho, C*Wo)   f32
        w1=jnp.asarray(w1_eff, jnp.bfloat16),            # (C*Wo, D)    bf16 MXU operand
        posb=jnp.asarray(posb, jnp.float32),             # (Ho, D)      f32
        gamma=jnp.asarray(np.ones((1, D), np.float32)),
        beta=jnp.asarray(np.zeros((1, D), np.float32)),
        w2=jnp.asarray(w2, jnp.bfloat16),                # (D, E)       bf16 MXU operand
    )


# ----------------------------------------------------------------------------
# Fused kernel: preprocessing + synthetic encode_image + caption concat.
# Grid = (N/TB,), TB samples per step, all weights VMEM-resident (constant maps).
# ----------------------------------------------------------------------------
def _make_kernel(TB, C, Hi, Wi, Ho, Wo, D, E):
    def kernel(x_ref, cap_ref, wwt_ref, wh_ref, offs_ref, w1_ref, posb_ref,
               gamma_ref, beta_ref, w2_ref, o_ref):
        # ---- preprocessing: 0.5*(1+x) -> bicubic resize -> clamp ----
        # width pass, batched over (sample, channel, row): M = TB*C*Hi
        x = x_ref[...].reshape(TB * C * Hi, Wi)                       # free sublane stack
        t = jnp.dot(x, wwt_ref[...], preferred_element_type=jnp.float32)  # (TB*C*Hi, Wo)

        # channels-on-lanes relayout: (TB, Hi, C*Wo)
        t4 = t.reshape(TB, C, Hi, Wo)
        t_cl = jnp.concatenate([t4[:, c] for c in range(C)], axis=-1)     # (TB, Hi, C*Wo)

        # height pass: one batched matmul per step (no block-diagonal zeros)
        wh_b = jnp.broadcast_to(wh_ref[...], (TB, Ho, Hi))
        y = jnp.einsum('boh,bhw->bow', wh_b, t_cl,
                       preferred_element_type=jnp.float32)                # (TB, Ho, C*Wo)
        y = y + offs_ref[...]                 # + resize(0.5*ones), broadcast over TB
        y = jnp.clip(y, 0.0, 1.0)             # CLIP mean/std folded into w1/posb

        # ---- synthetic encode_image ----
        # TODO(synk): the real injected CLIP ViT (`model.visual`) is not defined by
        # this module; a linear row-token embed + LayerNorm + mean-pool + projection
        # stands in for encode_image.
        y2 = y.reshape(TB * Ho, C * Wo).astype(jnp.bfloat16)
        h = jnp.dot(y2, w1_ref[...], preferred_element_type=jnp.float32)  # (TB*Ho, D)
        h = (h.reshape(TB, Ho, D) + posb_ref[...]).reshape(TB * Ho, D)    # bias + pos (+ folded norm)

        # LayerNorm over D (elementwise kept in f32)
        mu = jnp.mean(h, axis=-1, keepdims=True)
        var = jnp.mean((h - mu) ** 2, axis=-1, keepdims=True)
        hn = (h - mu) * jax.lax.rsqrt(var + 1e-5)
        hn = hn * gamma_ref[...] + beta_ref[...]

        # pool BEFORE projecting (pooling is linear, w2 has no bias): Ho x less MXU work
        pooled = jnp.mean(hn.reshape(TB, Ho, D), axis=1)                  # (TB, D)
        code = jnp.dot(pooled.astype(jnp.bfloat16), w2_ref[...],
                       preferred_element_type=jnp.float32)                # (TB, E)

        # ---- torch.cat((image_code, captions_clip), dim=1) ----
        # lane-tile-aligned slices of a (TB, 256) sublane/lane-dense output block
        o_ref[:, :E] = code
        o_ref[:, E:] = cap_ref[...]

    return kernel


def image_encoder_forward(fake_images, captions_clip, params, tb=8):
    N, C, Hi, Wi = fake_images.shape
    S = params["image_size"]
    Ho = Wo = S
    D, E = params["D"], params["E"]
    cap = captions_clip.shape[1]
    Etot = E + cap

    # host-side glue: pad batch to a multiple of the per-step batch TB
    TB = tb
    G = -(-N // TB)
    Np = G * TB
    if Np != N:
        fake_images = jnp.pad(fake_images, ((0, Np - N), (0, 0), (0, 0), (0, 0)))
        captions_clip = jnp.pad(captions_clip, ((0, Np - N), (0, 0)))

    # free layout plumbing (no transpose): stack channels along sublanes
    x_tall = fake_images.reshape(Np, C * Hi, Wi)

    kernel = _make_kernel(TB, C, Hi, Wi, Ho, Wo, D, E)
    out = pl.pallas_call(
        kernel,
        out_shape=jax.ShapeDtypeStruct((Np, Etot), jnp.float32),
        grid=(G,),
        in_specs=[
            pl.BlockSpec((TB, C * Hi, Wi), lambda g: (g, 0, 0)),   # images (per step)
            pl.BlockSpec((TB, cap), lambda g: (g, 0)),             # captions-clip (per step)
            pl.BlockSpec((Wi, Wo), lambda g: (0, 0)),              # 0.5 * width resize matrix
            pl.BlockSpec((Ho, Hi), lambda g: (0, 0)),              # height resize matrix
            pl.BlockSpec((Ho, C * Wo), lambda g: (0, 0)),          # resize(0.5*ones), channels-on-lanes
            pl.BlockSpec((C * Wo, D), lambda g: (0, 0)),           # embed weight (norm folded, bf16)
            pl.BlockSpec((Ho, D), lambda g: (0, 0)),               # pos + bias (+ folded norm bias)
            pl.BlockSpec((1, D), lambda g: (0, 0)),                # LN gamma
            pl.BlockSpec((1, D), lambda g: (0, 0)),                # LN beta
            pl.BlockSpec((D, E), lambda g: (0, 0)),                # output projection (bf16)
        ],
        out_specs=pl.BlockSpec((TB, Etot), lambda g: (g, 0)),
        compiler_params=pltpu.CompilerParams(
            dimension_semantics=("parallel",),          # even grid -> both v7x TCs
            vmem_limit_bytes=32 * 1024 * 1024),         # explicit budget (v7x: 64 MiB phys)
    )(x_tall, captions_clip, params["wwt_half"], params["wh"], params["offs"],
      params["w1"], params["posb"], params["gamma"], params["beta"], params["w2"])
    return out[:N]


if __name__ == "__main__":
    key = jax.random.PRNGKey(0)
    N, C, Hin, Win = 16, 3, 16, 16       # fake_images: NCHW in [-1, 1]; C=3 (CLIP mean/std)
    image_size = 32                      # model.visual.input_resolution (synthetic)
    D, E, cap_dim = 128, 128, 128        # lane-dense (>=128) embed / output widths
    TB = 8                               # 8 samples per grid step -> grid=(2,), even

    k_img, k_cap, k_par = jax.random.split(key, 3)
    fake_images = jax.random.uniform(k_img, (N, C, Hin, Win), jnp.float32, -1.0, 1.0)
    captions_clip = jax.random.normal(k_cap, (N, cap_dim), jnp.float32)
    params = build_params(k_par, C, Hin, Win, image_size, D, E)

    out = image_encoder_forward(fake_images, captions_clip, params, tb=TB)
    jax.block_until_ready(out)
    assert out.shape == (N, E + cap_dim)
    assert bool(jnp.all(jnp.isfinite(out)))
    print("KERNEL_OK")
</pallas_src>

<mosaic_0001>
module attributes {stable_mosaic.version = 11 : i64} {
  func.func @kernel(%arg0: i32, %arg1: memref<8x48x16xf32, #tpu.memory_space<vmem>>, %arg2: memref<8x128xf32, #tpu.memory_space<vmem>>, %arg3: memref<16x32xf32, #tpu.memory_space<vmem>>, %arg4: memref<32x16xf32, #tpu.memory_space<vmem>>, %arg5: memref<32x96xf32, #tpu.memory_space<vmem>>, %arg6: memref<96x128xbf16, #tpu.memory_space<vmem>>, %arg7: memref<32x128xf32, #tpu.memory_space<vmem>>, %arg8: memref<1x128xf32, #tpu.memory_space<vmem>>, %arg9: memref<1x128xf32, #tpu.memory_space<vmem>>, %arg10: memref<128x128xbf16, #tpu.memory_space<vmem>>, %arg11: memref<8x256xf32, #tpu.memory_space<vmem>>) attributes {dimension_semantics = [#tpu.dimension_semantics<parallel>], iteration_bounds = array<i64: 2>, scalar_prefetch = 0 : i64, scratch_operands = 0 : i64, tpu.core_type = #tpu.core_type<tc>, window_params = [{transform_indices = @transform_0, window_bounds = array<i64: 8, 48, 16>}, {transform_indices = @transform_1, window_bounds = array<i64: 8, 128>}, {pipeline_mode = #tpu.pipeline_mode<synchronous>, transform_indices = @transform_2, window_bounds = array<i64: 16, 32>}, {pipeline_mode = #tpu.pipeline_mode<synchronous>, transform_indices = @transform_3, window_bounds = array<i64: 32, 16>}, {pipeline_mode = #tpu.pipeline_mode<synchronous>, transform_indices = @transform_4, window_bounds = array<i64: 32, 96>}, {pipeline_mode = #tpu.pipeline_mode<synchronous>, transform_indices = @transform_5, window_bounds = array<i64: 96, 128>}, {pipeline_mode = #tpu.pipeline_mode<synchronous>, transform_indices = @transform_6, window_bounds = array<i64: 32, 128>}, {pipeline_mode = #tpu.pipeline_mode<synchronous>, transform_indices = @transform_7, window_bounds = array<i64: 1, 128>}, {pipeline_mode = #tpu.pipeline_mode<synchronous>, transform_indices = @transform_8, window_bounds = array<i64: 1, 128>}, {pipeline_mode = #tpu.pipeline_mode<synchronous>, transform_indices = @transform_9, window_bounds = array<i64: 128, 128>}, {transform_indices = @transform_10, window_bounds = array<i64: 8, 256>}]} {
    %c0 = arith.constant 0 : index
    %c0_0 = arith.constant 0 : index
    %c0_1 = arith.constant 0 : index
    %0 = vector.load %arg1[%c0, %c0_0, %c0_1] : memref<8x48x16xf32, #tpu.memory_space<vmem>>, vector<8x48x16xf32>
    %1 = vector.shape_cast %0 : vector<8x48x16xf32> to vector<384x16xf32>
    %c0_2 = arith.constant 0 : index
    %c0_3 = arith.constant 0 : index
    %2 = vector.load %arg3[%c0_2, %c0_3] : memref<16x32xf32, #tpu.memory_space<vmem>>, vector<16x32xf32>
    %cst = arith.constant dense<0.000000e+00> : vector<384x32xf32>
    %3 = tpu.matmul %1, %2, %cst {dimension_numbers = #tpu.dot_dimension_numbers<[1], [0], [0], [1], [0, 0, 1, 1], [], []>} : vector<384x16xf32>, vector<16x32xf32>, vector<384x32xf32> -> vector<384x32xf32>
    %4 = vector.shape_cast %3 : vector<384x32xf32> to vector<8x3x16x32xf32>
    %5 = vector.extract_strided_slice %4 {offsets = [0, 0, 0, 0], sizes = [8, 1, 16, 32], strides = [1, 1, 1, 1]} : vector<8x3x16x32xf32> to vector<8x1x16x32xf32>
    %6 = vector.shape_cast %5 : vector<8x1x16x32xf32> to vector<8x16x32xf32>
    %7 = vector.extract_strided_slice %4 {offsets = [0, 1, 0, 0], sizes = [8, 1, 16, 32], strides = [1, 1, 1, 1]} : vector<8x3x16x32xf32> to vector<8x1x16x32xf32>
    %8 = vector.shape_cast %7 : vector<8x1x16x32xf32> to vector<8x16x32xf32>
    %9 = vector.extract_strided_slice %4 {offsets = [0, 2, 0, 0], sizes = [8, 1, 16, 32], strides = [1, 1, 1, 1]} : vector<8x3x16x32xf32> to vector<8x1x16x32xf32>
    %10 = vector.shape_cast %9 : vector<8x1x16x32xf32> to vector<8x16x32xf32>
    %11 = tpu.concatenate %6, %8, %10 in 2 : vector<8x16x32xf32>, vector<8x16x32xf32>, vector<8x16x32xf32> -> vector<8x16x96xf32>
    %c0_4 = arith.constant 0 : index
    %c0_5 = arith.constant 0 : index
    %12 = vector.load %arg4[%c0_4, %c0_5] : memref<32x16xf32, #tpu.memory_space<vmem>>, vector<32x16xf32>
    %13 = vector.shape_cast %12 : vector<32x16xf32> to vector<1x32x16xf32>
    %14 = vector.broadcast %13 : vector<1x32x16xf32> to vector<8x32x16xf32>
    "tpu.trace_start"() <{level = 10 : i32, message = "boh,bhw->bow"}> : () -> ()
    %cst_6 = arith.constant dense<0.000000e+00> : vector<8x32x96xf32>
    %15 = tpu.matmul %14, %11, %cst_6 {dimension_numbers = #tpu.dot_dimension_numbers<[2], [1], [1], [2], [0, 0, 0, 1, 1, 2], [0], [0]>} : vector<8x32x16xf32>, vector<8x16x96xf32>, vector<8x32x96xf32> -> vector<8x32x96xf32>
    "tpu.trace_stop"() : () -> ()
    %c0_7 = arith.constant 0 : index
    %c0_8 = arith.constant 0 : index
    %16 = vector.load %arg5[%c0_7, %c0_8] : memref<32x96xf32, #tpu.memory_space<vmem>>, vector<32x96xf32>
    %17 = vector.shape_cast %16 : vector<32x96xf32> to vector<1x32x96xf32>
    %18 = vector.broadcast %17 : vector<1x32x96xf32> to vector<8x32x96xf32>
    %19 = arith.addf %15, %18 : vector<8x32x96xf32>
    %cst_9 = arith.constant 0.000000e+00 : f32
    %cst_10 = arith.constant 1.000000e+00 : f32
    %20 = vector.broadcast %cst_9 : f32 to vector<8x32x96xf32>
    %21 = arith.maximumf %20, %19 : vector<8x32x96xf32>
    %22 = vector.broadcast %cst_10 : f32 to vector<8x32x96xf32>
    %23 = arith.minimumf %22, %21 : vector<8x32x96xf32>
    %24 = vector.shape_cast %23 : vector<8x32x96xf32> to vector<256x96xf32>
    %25 = arith.truncf %24 : vector<256x96xf32> to vector<256x96xbf16>
    %c0_11 = arith.constant 0 : index
    %c0_12 = arith.constant 0 : index
    %26 = vector.load %arg6[%c0_11, %c0_12] : memref<96x128xbf16, #tpu.memory_space<vmem>>, vector<96x128xbf16>
    %cst_13 = arith.constant dense<0.000000e+00> : vector<256x128xf32>
    %27 = tpu.matmul %25, %26, %cst_13 {dimension_numbers = #tpu.dot_dimension_numbers<[1], [0], [0], [1], [0, 0, 1, 1], [], []>} : vector<256x96xbf16>, vector<96x128xbf16>, vector<256x128xf32> -> vector<256x128xf32>
    %28 = vector.shape_cast %27 : vector<256x128xf32> to vector<8x32x128xf32>
    %c0_14 = arith.constant 0 : index
    %c0_15 = arith.constant 0 : index
    %29 = vector.load %arg7[%c0_14, %c0_15] : memref<32x128xf32, #tpu.memory_space<vmem>>, vector<32x128xf32>
    %30 = vector.shape_cast %29 : vector<32x128xf32> to vector<1x32x128xf32>
    %31 = vector.broadcast %30 : vector<1x32x128xf32> to vector<8x32x128xf32>
    %32 = arith.addf %28, %31 : vector<8x32x128xf32>
    %33 = vector.shape_cast %32 : vector<8x32x128xf32> to vector<256x128xf32>
    %cst_16 = arith.constant dense<0.000000e+00> : vector<256xf32>
    %34 = vector.multi_reduction <add>, %33, %cst_16 [1] : vector<256x128xf32> to vector<256xf32>
    %35 = vector.shape_cast %34 : vector<256xf32> to vector<256x1xf32>
    %cst_17 = arith.constant 1.280000e+02 : f32
    %36 = vector.broadcast %cst_17 : f32 to vector<256x1xf32>
    %37 = arith.divf %35, %36 : vector<256x1xf32>
    %38 = vector.broadcast %37 : vector<256x1xf32> to vector<256x128xf32>
    %39 = arith.subf %33, %38 : vector<256x128xf32>
    %40 = arith.mulf %39, %39 : vector<256x128xf32>
    %cst_18 = arith.constant dense<0.000000e+00> : vector<256xf32>
    %41 = vector.multi_reduction <add>, %40, %cst_18 [1] : vector<256x128xf32> to vector<256xf32>
    %42 = vector.shape_cast %41 : vector<256xf32> to vector<256x1xf32>
    %cst_19 = arith.constant 1.280000e+02 : f32
    %43 = vector.broadcast %cst_19 : f32 to vector<256x1xf32>
    %44 = arith.divf %42, %43 : vector<256x1xf32>
    %45 = vector.broadcast %37 : vector<256x1xf32> to vector<256x128xf32>
    %46 = arith.subf %33, %45 : vector<256x128xf32>
    %cst_20 = arith.constant 9.99999974E-6 : f32
    %47 = vector.broadcast %cst_20 : f32 to vector<256x1xf32>
    %48 = arith.addf %44, %47 : vector<256x1xf32>
    %49 = math.rsqrt %48 : vector<256x1xf32>
    %50 = vector.broadcast %49 : vector<256x1xf32> to vector<256x128xf32>
    %51 = arith.mulf %46, %50 : vector<256x128xf32>
    %c0_21 = arith.constant 0 : index
    %c0_22 = arith.constant 0 : index
    %52 = vector.load %arg8[%c0_21, %c0_22] : memref<1x128xf32, #tpu.memory_space<vmem>>, vector<1x128xf32>
    %53 = vector.broadcast %52 : vector<1x128xf32> to vector<256x128xf32>
    %54 = arith.mulf %51, %53 : vector<256x128xf32>
    %c0_23 = arith.constant 0 : index
    %c0_24 = arith.constant 0 : index
    %55 = vector.load %arg9[%c0_23, %c0_24] : memref<1x128xf32, #tpu.memory_space<vmem>>, vector<1x128xf32>
    %56 = vector.broadcast %55 : vector<1x128xf32> to vector<256x128xf32>
    %57 = arith.addf %54, %56 : vector<256x128xf32>
    %58 = vector.shape_cast %57 : vector<256x128xf32> to vector<8x32x128xf32>
    %cst_25 = arith.constant dense<0.000000e+00> : vector<8x128xf32>
    %59 = vector.multi_reduction <add>, %58, %cst_25 [1] : vector<8x32x128xf32> to vector<8x128xf32>
    %cst_26 = arith.constant 3.200000e+01 : f32
    %60 = vector.broadcast %cst_26 : f32 to vector<8x128xf32>
    %61 = arith.divf %59, %60 : vector<8x128xf32>
    %62 = arith.truncf %61 : vector<8x128xf32> to vector<8x128xbf16>
    %c0_27 = arith.constant 0 : index
    %c0_28 = arith.constant 0 : index
    %63 = vector.load %arg10[%c0_27, %c0_28] : memref<128x128xbf16, #tpu.memory_space<vmem>>, vector<128x128xbf16>
    %cst_29 = arith.constant dense<0.000000e+00> : vector<8x128xf32>
    %64 = tpu.matmul %62, %63, %cst_29 {dimension_numbers = #tpu.dot_dimension_numbers<[1], [0], [0], [1], [0, 0, 1, 1], [], []>} : vector<8x128xbf16>, vector<128x128xbf16>, vector<8x128xf32> -> vector<8x128xf32>
    %c0_30 = arith.constant 0 : index
    %c0_31 = arith.constant 0 : index
    %65 = vector.load %arg11[%c0_30, %c0_31] : memref<8x256xf32, #tpu.memory_space<vmem>>, vector<8x128xf32>
    tpu.vector_store %arg11[%c0_30, %c0_31], %64 {strides = array<i32>} : memref<8x256xf32, #tpu.memory_space<vmem>>, vector<8x128xf32>,
    %c0_32 = arith.constant 0 : index
    %c0_33 = arith.constant 0 : index
    %66 = vector.load %arg2[%c0_32, %c0_33] : memref<8x128xf32, #tpu.memory_space<vmem>>, vector<8x128xf32>
    %c0_34 = arith.constant 0 : index
    %c128 = arith.constant 128 : index
    %67 = vector.load %arg11[%c0_34, %c128] : memref<8x256xf32, #tpu.memory_space<vmem>>, vector<8x128xf32>
    tpu.vector_store %arg11[%c0_34, %c128], %66 {strides = array<i32>} : memref<8x256xf32, #tpu.memory_space<vmem>>, vector<8x128xf32>,
    return
  }
  func.func @transform_0(%arg0: i32) -> (i32, i32, i32) {
    %c0_i32 = arith.constant 0 : i32
    %c0_i32_0 = arith.constant 0 : i32
    %c0_i32_1 = arith.constant 0 : i32
    return %arg0, %c0_i32, %c0_i32_0 : i32, i32, i32
  }
  func.func @transform_1(%arg0: i32) -> (i32, i32) {
    %c0_i32 = arith.constant 0 : i32
    %c0_i32_0 = arith.constant 0 : i32
    return %arg0, %c0_i32 : i32, i32
  }
  func.func @transform_2(%arg0: i32) -> (i32, i32) {
    %c0_i32 = arith.constant 0 : i32
    %c0_i32_0 = arith.constant 0 : i32
    %c0_i32_1 = arith.constant 0 : i32
    return %c0_i32, %c0_i32_0 : i32, i32
  }
  func.func @transform_3(%arg0: i32) -> (i32, i32) {
    %c0_i32 = arith.constant 0 : i32
    %c0_i32_0 = arith.constant 0 : i32
    %c0_i32_1 = arith.constant 0 : i32
    return %c0_i32, %c0_i32_0 : i32, i32
  }
  func.func @transform_4(%arg0: i32) -> (i32, i32) {
    %c0_i32 = arith.constant 0 : i32
    %c0_i32_0 = arith.constant 0 : i32
    %c0_i32_1 = arith.constant 0 : i32
    return %c0_i32, %c0_i32_0 : i32, i32
  }
  func.func @transform_5(%arg0: i32) -> (i32, i32) {
    %c0_i32 = arith.constant 0 : i32
    %c0_i32_0 = arith.constant 0 : i32
    %c0_i32_1 = arith.constant 0 : i32
    return %c0_i32, %c0_i32_0 : i32, i32
  }
  func.func @transform_6(%arg0: i32) -> (i32, i32) {
    %c0_i32 = arith.constant 0 : i32
    %c0_i32_0 = arith.constant 0 : i32
    %c0_i32_1 = arith.constant 0 : i32
    return %c0_i32, %c0_i32_0 : i32, i32
  }
  func.func @transform_7(%arg0: i32) -> (i32, i32) {
    %c0_i32 = arith.constant 0 : i32
    %c0_i32_0 = arith.constant 0 : i32
    %c0_i32_1 = arith.constant 0 : i32
    return %c0_i32, %c0_i32_0 : i32, i32
  }
  func.func @transform_8(%arg0: i32) -> (i32, i32) {
    %c0_i32 = arith.constant 0 : i32
    %c0_i32_0 = arith.constant 0 : i32
    %c0_i32_1 = arith.constant 0 : i32
    return %c0_i32, %c0_i32_0 : i32, i32
  }
  func.func @transform_9(%arg0: i32) -> (i32, i32) {
    %c0_i32 = arith.constant 0 : i32
    %c0_i32_0 = arith.constant 0 : i32
    %c0_i32_1 = arith.constant 0 : i32
    return %c0_i32, %c0_i32_0 : i32, i32
  }
  func.func @transform_10(%arg0: i32) -> (i32, i32) {
    %c0_i32 = arith.constant 0 : i32
    %c0_i32_0 = arith.constant 0 : i32
    return %arg0, %c0_i32 : i32, i32
  }
}

</mosaic_0001>

<llo_original>
// kernel: tpu_custom_call.1
$region0: #{tpu_custom_call.1}
  #allocation0 [shape = 'u32[]', space=smem, size = 0x4, offset = 0x4, fixed_abs, tag = 'smem constant byte address 0x4 - core index']
  #allocation1 [shape = 'u32[144,128]{1,0:T(1,128)}', space=vmem, size = 0x12000, scoped, tag = 'internal scratch']
  %s0 = inlined_call_operand.vmem [shape: f32[16,48,16], index: 0, kind: input, shape index: {}]
  %s1 = inlined_call_operand.vmem [shape: f32[16,128], index: 1, kind: input, shape index: {}]
  %s2 = inlined_call_operand.vmem [shape: f32[16,32], index: 2, kind: input, shape index: {}]
  %s3 = inlined_call_operand.vmem [shape: f32[32,16], index: 3, kind: input, shape index: {}]
  %s4 = inlined_call_operand.vmem [shape: f32[32,96], index: 4, kind: input, shape index: {}]
  %s5 = inlined_call_operand.vmem [shape: bf16[96,128], index: 5, kind: input, shape index: {}]
  %s6 = inlined_call_operand.vmem [shape: f32[32,128], index: 6, kind: input, shape index: {}]
  %s7 = inlined_call_operand.vmem [shape: f32[1,128], index: 7, kind: input, shape index: {}]
  %s8 = inlined_call_operand.vmem [shape: f32[1,128], index: 8, kind: input, shape index: {}]
  %s9 = inlined_call_operand.vmem [shape: bf16[128,128], index: 9, kind: input, shape index: {}]
  %s10 = inlined_call_operand.hbm [shape: f32[16,256], index: 10, kind: output, shape index: {}]
  %s11 = sld [smem:[#allocation0]]
  $region73: #{tpu_custom_call.1} parent=0
    _
  %s13 = ssub.s32 1, %s11
  %s14 = scalar_select 0, %s13, %s11
  $region1: #{tpu_custom_call.1} parent=0
    #allocation2 [shape = 'u8[16384]{0}', space=vmem, size = 0x4000, scoped, tag = 'output window, operand 0']
    #allocation3 [shape = 's32[2]{0}', space=sflag, size = 0x8, scoped, tag = 'scoped memory for tpu_custom_call.1']
    %15 = vsyncpa [#allocation3], 0
    %s16 = scalar_lea.sflag [#allocation3], 1
    %17 = vsyncpa %s16, 0
    loop: start=0, step=1, limit=4
    $region2: #{tpu_custom_call.1} parent=1 // loop_pre_header
      _
    $region3: #{tpu_custom_call.1} parent=1 // loop_header
      %s19 = sphi 0, %s23
      %p20 = scmp.ge.s32.totalorder %s19, 4
      %s29 = sphi 0, %s31
      %s32 = sphi 0, %s29
      %s33 = sphi 0, %s32
      %s49 = sphi 0, %s33
      %s55 = sphi 0, %s57
      %s58 = sphi 0, %s55
      %s59 = sphi 0, %s58
      %s75 = sphi 0, %s59
      %s79 = sphi 0, %s79
      %s81 = sphi 0, %s79
      %s82 = sphi 0, %s81
      %s96 = sphi 0, %s82
      %s100 = sphi 0, %s100
      %s102 = sphi 0, %s100
      %s103 = sphi 0, %s102
      %s117 = sphi 0, %s103
      %s121 = sphi 0, %s121
      %s123 = sphi 0, %s121
      %s124 = sphi 0, %s123
      %s138 = sphi 0, %s124
      %s142 = sphi 0, %s142
      %s144 = sphi 0, %s142
      %s145 = sphi 0, %s144
      %s159 = sphi 0, %s145
      %s163 = sphi 0, %s163
      %s165 = sphi 0, %s163
      %s166 = sphi 0, %s165
      %s180 = sphi 0, %s166
      %s184 = sphi 0, %s184
      %s186 = sphi 0, %s184
      %s187 = sphi 0, %s186
      %s201 = sphi 0, %s187
      %s205 = sphi 0, %s205
      %s207 = sphi 0, %s205
      %s208 = sphi 0, %s207
      %s222 = sphi 0, %s208
      %s226 = sphi 0, %s226
      %s228 = sphi 0, %s226
      %s229 = sphi 0, %s228
      %s243 = sphi 0, %s229
      %s249 = sphi 0, %s251
      %s252 = sphi 0, %s249
      %s253 = sphi 0, %s252
      %s269 = sphi 0, %s253
    $region4: #{tpu_custom_call.1} parent=1 // loop_header_branch
      %22 = sbr.rel (%p20) target = $region8
    $region5: #{tpu_custom_call.1} parent=1 // loop_body
      %s24 = ssub.s32 %s19, 1
      %s25 = ssub.s32 %s19, 2
      %s26 = sadd.s32 %s19, 1
      %s27 = ssub.s32 %s19, %s26
      %p28 = scmp.eq.s32.totalorder %s27, 0
      %s30 = sadd.s32 %s29, 1
      %s31 = scalar_select %p28, %s29, %s30
      %p34 = pneg %p28
      %p35 = scmp.eq.s32.totalorder %s19, 1
      %p36 = por %p34, %p35
      %p37 = scmp.ne.s32.totalorder %s29, %s32
      %p38 = scmp.eq.s32.totalorder %s19, 0
      %p39 = por %p37, %p38
      %p40 = scmp.ne.s32.totalorder %s29, %s32
      %p41 = scmp.eq.s32.totalorder %s24, 1
      %p42 = por %p40, %p41
      %p43 = scmp.ne.s32.totalorder %s32, %s33
      %p44 = scmp.eq.s32.totalorder %s24, 0
      %p45 = por %p43, %p44
      %p46 = scmp.ne.s32.totalorder %s32, %s33
      %p47 = scmp.eq.s32.totalorder %s25, 1
      %p48 = por %p46, %p47
      %p50 = scmp.ne.s32.totalorder %s33, %s49
      %p51 = scmp.eq.s32.totalorder %s25, 0
      %p52 = por %p50, %p51
      %s53 = ssub.s32 %s19, %s26
      %p54 = scmp.eq.s32.totalorder %s53, 0
      %s56 = sadd.s32 %s55, 1
      %s57 = scalar_select %p54, %s55, %s56
      %p60 = pneg %p54
      %p61 = scmp.eq.s32.totalorder %s19, 1
      %p62 = por %p60, %p61
      %p63 = scmp.ne.s32.totalorder %s55, %s58
      %p64 = scmp.eq.s32.totalorder %s19, 0
      %p65 = por %p63, %p64
      %p66 = scmp.ne.s32.totalorder %s55, %s58
      %p67 = scmp.eq.s32.totalorder %s24, 1
      %p68 = por %p66, %p67
      %p69 = scmp.ne.s32.totalorder %s58, %s59
      %p70 = scmp.eq.s32.totalorder %s24, 0
      %p71 = por %p69, %p70
      %p72 = scmp.ne.s32.totalorder %s58, %s59
      %p73 = scmp.eq.s32.totalorder %s25, 1
      %p74 = por %p72, %p73
      %p76 = scmp.ne.s32.totalorder %s59, %s75
      %p77 = scmp.eq.s32.totalorder %s25, 0
      %p78 = por %p76, %p77
      %s80 = sadd.s32 %s79, 1
      %p83 = scmp.eq.s32.totalorder %s19, 1
      %p84 = scmp.ne.s32.totalorder %s79, %s81
      %p85 = scmp.eq.s32.totalorder %s19, 0
      %p86 = por %p84, %p85
      %p87 = scmp.ne.s32.totalorder %s79, %s81
      %p88 = scmp.eq.s32.totalorder %s24, 1
      %p89 = por %p87, %p88
      %p90 = scmp.ne.s32.totalorder %s81, %s82
      %p91 = scmp.eq.s32.totalorder %s24, 0
      %p92 = por %p90, %p91
      %p93 = scmp.ne.s32.totalorder %s81, %s82
      %p94 = scmp.eq.s32.totalorder %s25, 1
      %p95 = por %p93, %p94
      %p97 = scmp.ne.s32.totalorder %s82, %s96
      %p98 = scmp.eq.s32.totalorder %s25, 0
      %p99 = por %p97, %p98
      %s101 = sadd.s32 %s100, 1
      %p104 = scmp.eq.s32.totalorder %s19, 1
      %p105 = scmp.ne.s32.totalorder %s100, %s102
      %p106 = scmp.eq.s32.totalorder %s19, 0
      %p107 = por %p105, %p106
      %p108 = scmp.ne.s32.totalorder %s100, %s102
      %p109 = scmp.eq.s32.totalorder %s24, 1
      %p110 = por %p108, %p109
      %p111 = scmp.ne.s32.totalorder %s102, %s103
      %p112 = scmp.eq.s32.totalorder %s24, 0
      %p113 = por %p111, %p112
      %p114 = scmp.ne.s32.totalorder %s102, %s103
      %p115 = scmp.eq.s32.totalorder %s25, 1
      %p116 = por %p114, %p115
      %p118 = scmp.ne.s32.totalorder %s103, %s117
      %p119 = scmp.eq.s32.totalorder %s25, 0
      %p120 = por %p118, %p119
      %s122 = sadd.s32 %s121, 1
      %p125 = scmp.eq.s32.totalorder %s19, 1
      %p126 = scmp.ne.s32.totalorder %s121, %s123
      %p127 = scmp.eq.s32.totalorder %s19, 0
      %p128 = por %p126, %p127
      %p129 = scmp.ne.s32.totalorder %s121, %s123
      %p130 = scmp.eq.s32.totalorder %s24, 1
      %p131 = por %p129, %p130
      %p132 = scmp.ne.s32.totalorder %s123, %s124
      %p133 = scmp.eq.s32.totalorder %s24, 0
      %p134 = por %p132, %p133
      %p135 = scmp.ne.s32.totalorder %s123, %s124
      %p136 = scmp.eq.s32.totalorder %s25, 1
      %p137 = por %p135, %p136
      %p139 = scmp.ne.s32.totalorder %s124, %s138
      %p140 = scmp.eq.s32.totalorder %s25, 0
      %p141 = por %p139, %p140
      %s143 = sadd.s32 %s142, 1
      %p146 = scmp.eq.s32.totalorder %s19, 1
      %p147 = scmp.ne.s32.totalorder %s142, %s144
      %p148 = scmp.eq.s32.totalorder %s19, 0
      %p149 = por %p147, %p148
      %p150 = scmp.ne.s32.totalorder %s142, %s144
      %p151 = scmp.eq.s32.totalorder %s24, 1
      %p152 = por %p150, %p151
      %p153 = scmp.ne.s32.totalorder %s144, %s145
      %p154 = scmp.eq.s32.totalorder %s24, 0
      %p155 = por %p153, %p154
      %p156 = scmp.ne.s32.totalorder %s144, %s145
      %p157 = scmp.eq.s32.totalorder %s25, 1
      %p158 = por %p156, %p157
      %p160 = scmp.ne.s32.totalorder %s145, %s159
      %p161 = scmp.eq.s32.totalorder %s25, 0
      %p162 = por %p160, %p161
      %s164 = sadd.s32 %s163, 1
      %p167 = scmp.eq.s32.totalorder %s19, 1
      %p168 = scmp.ne.s32.totalorder %s163, %s165
      %p169 = scmp.eq.s32.totalorder %s19, 0
      %p170 = por %p168, %p169
      %p171 = scmp.ne.s32.totalorder %s163, %s165
      %p172 = scmp.eq.s32.totalorder %s24, 1
      %p173 = por %p171, %p172
      %p174 = scmp.ne.s32.totalorder %s165, %s166
      %p175 = scmp.eq.s32.totalorder %s24, 0
      %p176 = por %p174, %p175
      %p177 = scmp.ne.s32.totalorder %s165, %s166
      %p178 = scmp.eq.s32.totalorder %s25, 1
      %p179 = por %p177, %p178
      %p181 = scmp.ne.s32.totalorder %s166, %s180
      %p182 = scmp.eq.s32.totalorder %s25, 0
      %p183 = por %p181, %p182
      %s185 = sadd.s32 %s184, 1
      %p188 = scmp.eq.s32.totalorder %s19, 1
      %p189 = scmp.ne.s32.totalorder %s184, %s186
      %p190 = scmp.eq.s32.totalorder %s19, 0
      %p191 = por %p189, %p190
      %p192 = scmp.ne.s32.totalorder %s184, %s186
      %p193 = scmp.eq.s32.totalorder %s24, 1
      %p194 = por %p192, %p193
      %p195 = scmp.ne.s32.totalorder %s186, %s187
      %p196 = scmp.eq.s32.totalorder %s24, 0
      %p197 = por %p195, %p196
      %p198 = scmp.ne.s32.totalorder %s186, %s187
      %p199 = scmp.eq.s32.totalorder %s25, 1
      %p200 = por %p198, %p199
      %p202 = scmp.ne.s32.totalorder %s187, %s201
      %p203 = scmp.eq.s32.totalorder %s25, 0
      %p204 = por %p202, %p203
      %s206 = sadd.s32 %s205, 1
      %p209 = scmp.eq.s32.totalorder %s19, 1
      %p210 = scmp.ne.s32.totalorder %s205, %s207
      %p211 = scmp.eq.s32.totalorder %s19, 0
      %p212 = por %p210, %p211
      %p213 = scmp.ne.s32.totalorder %s205, %s207
      %p214 = scmp.eq.s32.totalorder %s24, 1
      %p215 = por %p213, %p214
      %p216 = scmp.ne.s32.totalorder %s207, %s208
      %p217 = scmp.eq.s32.totalorder %s24, 0
      %p218 = por %p216, %p217
      %p219 = scmp.ne.s32.totalorder %s207, %s208
      %p220 = scmp.eq.s32.totalorder %s25, 1
      %p221 = por %p219, %p220
      %p223 = scmp.ne.s32.totalorder %s208, %s222
      %p224 = scmp.eq.s32.totalorder %s25, 0
      %p225 = por %p223, %p224
      %s227 = sadd.s32 %s226, 1
      %p230 = scmp.eq.s32.totalorder %s19, 1
      %p231 = scmp.ne.s32.totalorder %s226, %s228
      %p232 = scmp.eq.s32.totalorder %s19, 0
      %p233 = por %p231, %p232
      %p234 = scmp.ne.s32.totalorder %s226, %s228
      %p235 = scmp.eq.s32.totalorder %s24, 1
      %p236 = por %p234, %p235
      %p237 = scmp.ne.s32.totalorder %s228, %s229
      %p238 = scmp.eq.s32.totalorder %s24, 0
      %p239 = por %p237, %p238
      %p240 = scmp.ne.s32.totalorder %s228, %s229
      %p241 = scmp.eq.s32.totalorder %s25, 1
      %p242 = por %p240, %p241
      %p244 = scmp.ne.s32.totalorder %s229, %s243
      %p245 = scmp.eq.s32.totalorder %s25, 0
      %p246 = por %p244, %p245
      %s247 = ssub.s32 %s19, %s26
      %p248 = scmp.eq.s32.totalorder %s247, 0
      %s250 = sadd.s32 %s249, 1
      %s251 = scalar_select %p248, %s249, %s250
      %p254 = pneg %p248
      %p255 = scmp.eq.s32.totalorder %s19, 1
      %p256 = por %p254, %p255
      %p257 = scmp.ne.s32.totalorder %s249, %s252
      %p258 = scmp.eq.s32.totalorder %s19, 0
      %p259 = por %p257, %p258
      %p260 = scmp.ne.s32.totalorder %s249, %s252
      %p261 = scmp.eq.s32.totalorder %s24, 1
      %p262 = por %p260, %p261
      %p263 = scmp.ne.s32.totalorder %s252, %s253
      %p264 = scmp.eq.s32.totalorder %s24, 0
      %p265 = por %p263, %p264
      %p266 = scmp.ne.s32.totalorder %s252, %s253
      %p267 = scmp.eq.s32.totalorder %s25, 1
      %p268 = por %p266, %p267
      %p270 = scmp.ne.s32.totalorder %s253, %s269
      %p271 = scmp.eq.s32.totalorder %s25, 0
      %p272 = por %p270, %p271
      %p273 = scmp.le.s32.totalorder 1, %s19
      %p274 = scmp.lt.s32.totalorder %s19, 3
      %p275 = pnand %p273, %p274
      %p276 = pneg %p275
      // Predicated region
      $region9: #{tpu_custom_call.1} parent=5 // pred_check
        _
      $region10: #{tpu_custom_call.1} parent=5 // pred_check_branch
        %278 = sbr.rel (%p275) target = $region12
      $region11: #{tpu_custom_call.1} parent=5 // pred_region
        %s279 = ssub.s32 %s19, 1
        // Predicated region
        $region13: #{tpu_custom_call.1} parent=11 // pred_check
          %p280 = pneg %p92
        $region14: #{tpu_custom_call.1} parent=11 // pred_check_branch
          %282 = sbr.rel (%p280) target = $region16
        $region15: #{tpu_custom_call.1} parent=11 // pred_region
          _
        $region16: #{tpu_custom_call.1} parent=11 // pred_fallthru
          _
        // Predicated region
        $region17: #{tpu_custom_call.1} parent=11 // pred_check
          %p283 = pneg %p113
        $region18: #{tpu_custom_call.1} parent=11 // pred_check_branch
          %285 = sbr.rel (%p283) target = $region20
        $region19: #{tpu_custom_call.1} parent=11 // pred_region
          _
        $region20: #{tpu_custom_call.1} parent=11 // pred_fallthru
          _
        // Predicated region
        $region21: #{tpu_custom_call.1} parent=11 // pred_check
          %p286 = pneg %p134
        $region22: #{tpu_custom_call.1} parent=11 // pred_check_branch
          %288 = sbr.rel (%p286) target = $region24
        $region23: #{tpu_custom_call.1} parent=11 // pred_region
          _
        $region24: #{tpu_custom_call.1} parent=11 // pred_fallthru
          _
        // Predicated region
        $region25: #{tpu_custom_call.1} parent=11 // pred_check
          %p289 = pneg %p155
        $region26: #{tpu_custom_call.1} parent=11 // pred_check_branch
          %291 = sbr.rel (%p289) target = $region28
        $region27: #{tpu_custom_call.1} parent=11 // pred_region
          _
        $region28: #{tpu_custom_call.1} parent=11 // pred_fallthru
          _
        // Predicated region
        $region29: #{tpu_custom_call.1} parent=11 // pred_check
          %p292 = pneg %p176
        $region30: #{tpu_custom_call.1} parent=11 // pred_check_branch
          %294 = sbr.rel (%p292) target = $region32
        $region31: #{tpu_custom_call.1} parent=11 // pred_region
          _
        $region32: #{tpu_custom_call.1} parent=11 // pred_fallthru
          _
        // Predicated region
        $region33: #{tpu_custom_call.1} parent=11 // pred_check
          %p295 = pneg %p197
        $region34: #{tpu_custom_call.1} parent=11 // pred_check_branch
          %297 = sbr.rel (%p295) target = $region36
        $region35: #{tpu_custom_call.1} parent=11 // pred_region
          _
        $region36: #{tpu_custom_call.1} parent=11 // pred_fallthru
          _
        // Predicated region
        $region37: #{tpu_custom_call.1} parent=11 // pred_check
          %p298 = pneg %p218
        $region38: #{tpu_custom_call.1} parent=11 // pred_check_branch
          %300 = sbr.rel (%p298) target = $region40
        $region39: #{tpu_custom_call.1} parent=11 // pred_region
          _
        $region40: #{tpu_custom_call.1} parent=11 // pred_fallthru
          _
        // Predicated region
        $region41: #{tpu_custom_call.1} parent=11 // pred_check
          %p301 = pneg %p239
        $region42: #{tpu_custom_call.1} parent=11 // pred_check_branch
          %303 = sbr.rel (%p301) target = $region44
        $region43: #{tpu_custom_call.1} parent=11 // pred_region
          _
        $region44: #{tpu_custom_call.1} parent=11 // pred_fallthru
          _
      $region12: #{tpu_custom_call.1} parent=5 // pred_fallthru
        _
      %p304 = scmp.lt.s32.totalorder %s19, 2
      // Predicated region
      $region45: #{tpu_custom_call.1} parent=5 // pred_check
        %p305 = pneg %p304
      $region46: #{tpu_custom_call.1} parent=5 // pred_check_branch
        %307 = sbr.rel (%p305) target = $region48
      $region47: #{tpu_custom_call.1} parent=5 // pred_region
        // Predicated region
        $region49: #{tpu_custom_call.1} parent=47 // pred_check
          %p308 = pneg %p39
        $region50: #{tpu_custom_call.1} parent=47 // pred_check_branch
          %310 = sbr.rel (%p308) target = $region52
        $region51: #{tpu_custom_call.1} parent=47 // pred_region
          %s311 = smul.u32 8, %s19
          %p312 = scmp.lt.s32.totalorder %s311, 15
          %s313 = scalar_select %p312, %s311, 15
          %s314 = smul.addr %s313, 6
          %s315 = smul.addr %s314, 8
          %s316 = scalar_lea.vmem %s0, %s315
          %s317 = smul.u32 8, %s19
        $region52: #{tpu_custom_call.1} parent=47 // pred_fallthru
          _
        // Predicated region
        $region53: #{tpu_custom_call.1} parent=47 // pred_check
          %p318 = pneg %p65
        $region54: #{tpu_custom_call.1} parent=47 // pred_check_branch
          %320 = sbr.rel (%p318) target = $region56
        $region55: #{tpu_custom_call.1} parent=47 // pred_region
          %p321 = scmp.lt.s32.totalorder %s19, 1
          %s322 = scalar_select %p321, %s19, 1
          %s323 = smul.addr %s322, 8
          %s324 = scalar_lea.vmem %s1, %s323
        $region56: #{tpu_custom_call.1} parent=47 // pred_fallthru
          _
      $region48: #{tpu_custom_call.1} parent=5 // pred_fallthru
        _
      %p325 = scmp.le.s32.totalorder 1, %s19
      %p326 = scmp.lt.s32.totalorder %s19, 3
      %p327 = pnand %p325, %p326
      %p328 = pneg %p327
      // Predicated region
      $region57: #{tpu_custom_call.1} parent=5 // pred_check
        _
      $region58: #{tpu_custom_call.1} parent=5 // pred_check_branch
        %330 = sbr.rel (%p327) target = $region60
      $region59: #{tpu_custom_call.1} parent=5 // pred_region
        %s331 = ssub.s32 %s19, 1
        %s332 = smul.u32 8, %s24
        %p333 = scmp.lt.s32.totalorder %s332, 15
        %s334 = scalar_select %p333, %s332, 15
        %s335 = smul.addr %s334, 6
        %s336 = smul.addr %s335, 8
        %s337 = scalar_lea.vmem %s0, %s336
        %p338 = pneg %p45
        %p339 = pneg %p42
        %p340 = scmp.lt.s32.totalorder %s24, 1
        %s341 = scalar_select %p340, %s24, 1
        %s342 = smul.addr %s341, 8
        %s343 = scalar_lea.vmem %s1, %s342
        %p344 = pneg %p71
        %p345 = pneg %p68
        %p346 = pneg %p92
        %p347 = pneg %p89
        %p348 = pneg %p113
        %p349 = pneg %p110
        %p350 = pneg %p134
        %p351 = pneg %p131
        %p352 = pneg %p155
        %p353 = pneg %p152
        %p354 = pneg %p176
        %p355 = pneg %p173
        %p356 = pneg %p197
        %p357 = pneg %p194
        %p358 = pneg %p218
        %p359 = pneg %p215
        %p360 = pneg %p239
        %p361 = pneg %p236
        %p362 = pneg %p265
        %p363 = pneg %p262
        %s364 = sand.u32 %s252, 1
        %s365 = scalar_lea.sflag [#allocation3], %s364
        %s366 = sand.u32 %s252, 1
        %s367 = smul.addr %s366, 16
        %s368 = scalar_lea.vmem [#allocation2], %s367
        %s369 = smul.u32 8, %s24
        %p370 = scmp.lt.s32.totalorder %s369, 15
        %s371 = scalar_select %p370, %s369, 15
        %s372 = smul.addr %s371, 6
        %s373 = smul.addr %s372, 8
        %s374 = scalar_lea.vmem %s0, %s373
        %s375 = smul.u32 8, %s24
        %p376 = scmp.lt.s32.totalorder %s24, 1
        %s377 = scalar_select %p376, %s24, 1
        %s378 = smul.addr %s377, 8
        %s379 = scalar_lea.vmem %s1, %s378
        %v381 = vld [vmem:[%s374] sm:$0xff]
        %v382 = vld [vmem:[%s374 + $0x8] sm:$0xff]
        %v383 = vld [vmem:[%s374 + $0x10] sm:$0xff]
        %v384 = vld [vmem:[%s374 + $0x18] sm:$0xff]
        %v385 = vld [vmem:[%s374 + $0x20] sm:$0xff]
        %v386 = vld [vmem:[%s374 + $0x28] sm:$0xff]
        %v387 = vld [vmem:[%s374 + $0x30] sm:$0xff]
        %v388 = vld [vmem:[%s374 + $0x38] sm:$0xff]
        %v389 = vld [vmem:[%s374 + $0x40] sm:$0xff]
        %v390 = vld [vmem:[%s374 + $0x48] sm:$0xff]
        %v391 = vld [vmem:[%s374 + $0x50] sm:$0xff]
        %v392 = vld [vmem:[%s374 + $0x58] sm:$0xff]
        %v393 = vld [vmem:[%s374 + $0x60] sm:$0xff]
        %v394 = vld [vmem:[%s374 + $0x68] sm:$0xff]
        %v395 = vld [vmem:[%s374 + $0x70] sm:$0xff]
        %v396 = vld [vmem:[%s374 + $0x78] sm:$0xff]
        %v397 = vld [vmem:[%s374 + $0x80] sm:$0xff]
        %v398 = vld [vmem:[%s374 + $0x88] sm:$0xff]
        %v399 = vld [vmem:[%s374 + $0x90] sm:$0xff]
        %v400 = vld [vmem:[%s374 + $0x98] sm:$0xff]
        %v401 = vld [vmem:[%s374 + $0xa0] sm:$0xff]
        %v402 = vld [vmem:[%s374 + $0xa8] sm:$0xff]
        %v403 = vld [vmem:[%s374 + $0xb0] sm:$0xff]
        %v404 = vld [vmem:[%s374 + $0xb8] sm:$0xff]
        %v405 = vld [vmem:[%s374 + $0xc0] sm:$0xff]
        %v406 = vld [vmem:[%s374 + $0xc8] sm:$0xff]
        %v407 = vld [vmem:[%s374 + $0xd0] sm:$0xff]
        %v408 = vld [vmem:[%s374 + $0xd8] sm:$0xff]
        %v409 = vld [vmem:[%s374 + $0xe0] sm:$0xff]
        %v410 = vld [vmem:[%s374 + $0xe8] sm:$0xff]
        %v411 = vld [vmem:[%s374 + $0xf0] sm:$0xff]
        %v412 = vld [vmem:[%s374 + $0xf8] sm:$0xff]
        %v413 = vld [vmem:[%s374 + $0x100] sm:$0xff]
        %v414 = vld [vmem:[%s374 + $0x108] sm:$0xff]
        %v415 = vld [vmem:[%s374 + $0x110] sm:$0xff]
        %v416 = vld [vmem:[%s374 + $0x118] sm:$0xff]
        %v417 = vld [vmem:[%s374 + $0x120] sm:$0xff]
        %v418 = vld [vmem:[%s374 + $0x128] sm:$0xff]
        %v419 = vld [vmem:[%s374 + $0x130] sm:$0xff]
        %v420 = vld [vmem:[%s374 + $0x138] sm:$0xff]
        %v421 = vld [vmem:[%s374 + $0x140] sm:$0xff]
        %v422 = vld [vmem:[%s374 + $0x148] sm:$0xff]
        %v423 = vld [vmem:[%s374 + $0x150] sm:$0xff]
        %v424 = vld [vmem:[%s374 + $0x158] sm:$0xff]
        %v425 = vld [vmem:[%s374 + $0x160] sm:$0xff]
        %v426 = vld [vmem:[%s374 + $0x168] sm:$0xff]
        %v427 = vld [vmem:[%s374 + $0x170] sm:$0xff]
        %v428 = vld [vmem:[%s374 + $0x178] sm:$0xff]
        %v429 = vld [vmem:[%s2] sm:$0xff]
        %v430 = vld [vmem:[%s2 + $0x8] sm:$0xff]
        %vm431 = vcmask 130048
        %v433 = vsel %vm431, %v381, 0
        %v436 = vsel %vm431, %v382, 0
        %v439 = vsel %vm431, %v383, 0
        %v442 = vsel %vm431, %v384, 0
        %v445 = vsel %vm431, %v385, 0
        %v448 = vsel %vm431, %v386, 0
        %v451 = vsel %vm431, %v387, 0
        %v454 = vsel %vm431, %v388, 0
        %v457 = vsel %vm431, %v389, 0
        %v460 = vsel %vm431, %v390, 0
        %v463 = vsel %vm431, %v391, 0
        %v466 = vsel %vm431, %v392, 0
        %v469 = vsel %vm431, %v393, 0
        %v472 = vsel %vm431, %v394, 0
        %v475 = vsel %vm431, %v395, 0
        %v478 = vsel %vm431, %v396, 0
        %v481 = vsel %vm431, %v397, 0
        %v484 = vsel %vm431, %v398, 0
        %v487 = vsel %vm431, %v399, 0
        %v490 = vsel %vm431, %v400, 0
        %v493 = vsel %vm431, %v401, 0
        %v496 = vsel %vm431, %v402, 0
        %v499 = vsel %vm431, %v403, 0
        %v502 = vsel %vm431, %v404, 0
        %v505 = vsel %vm431, %v405, 0
        %v508 = vsel %vm431, %v406, 0
        %v511 = vsel %vm431, %v407, 0
        %v514 = vsel %vm431, %v408, 0
        %v517 = vsel %vm431, %v409, 0
        %v520 = vsel %vm431, %v410, 0
        %v523 = vsel %vm431, %v411, 0
        %v526 = vsel %vm431, %v412, 0
        %v529 = vsel %vm431, %v413, 0
        %v532 = vsel %vm431, %v414, 0
        %v535 = vsel %vm431, %v415, 0
        %v538 = vsel %vm431, %v416, 0
        %v541 = vsel %vm431, %v417, 0
        %v544 = vsel %vm431, %v418, 0
        %v547 = vsel %vm431, %v419, 0
        %v550 = vsel %vm431, %v420, 0
        %v553 = vsel %vm431, %v421, 0
        %v556 = vsel %vm431, %v422, 0
        %v559 = vsel %vm431, %v423, 0
        %v562 = vsel %vm431, %v424, 0
        %v565 = vsel %vm431, %v425, 0
        %v568 = vsel %vm431, %v426, 0
        %v571 = vsel %vm431, %v427, 0
        %v574 = vsel %vm431, %v428, 0
        %576 = vmatprep.subr.mxu0 0.0
        %577 = vmatpush1.msra.mxu0 0.0
        %578 = vmatprep.subr.mxu0 0.0
        %579 = vmatpush1.msra.mxu0 0.0
        %580 = vmatprep.subr.mxu0 0.0
        %581 = vmatpush1.msra.mxu0 0.0
        %582 = vmatprep.subr.mxu0 0.0
        %583 = vmatpush1.msra.mxu0 0.0
        %584 = vmatprep.subr.mxu0 0.0
        %585 = vmatpush1.msra.mxu0 0.0
        %586 = vmatprep.subr.mxu0 0.0
        %587 = vmatpush1.msra.mxu0 0.0
        %588 = vmatprep.subr.mxu0 0.0
        %589 = vmatpush1.msra.mxu0 0.0
        %590 = vmatprep.subr.mxu0 0.0
        %591 = vmatpush1.msra.mxu0 0.0
        %592 = vmatprep.subr.mxu0 0.0
        %593 = vmatpush1.msra.mxu0 0.0
        %594 = vmatprep.subr.mxu0 0.0
        %595 = vmatpush1.msra.mxu0 0.0
        %596 = vmatprep.subr.mxu0 0.0
        %597 = vmatpush1.msra.mxu0 0.0
        %598 = vmatprep.subr.mxu0 0.0
        %599 = vmatpush1.msra.mxu0 0.0
        %600 = vmatprep.subr.mxu0 0.0
        %601 = vmatpush1.msra.mxu0 0.0
        %602 = vmatprep.subr.mxu0 0.0
        %603 = vmatpush1.msra.mxu0 0.0
        %604 = vmatprep.subr.mxu0 0.0
        %605 = vmatpush1.msra.mxu0 %v430
        %606 = vmatprep.subr.mxu0 0.0
        %607 = vmatpush1.msra.mxu0 %v429
        %608 = vmatprep.subr.mxu0 0.0
        %609 = vmatpush2.msra.mxu0 0.0
        %610 = vmatprep.subr.mxu0 0.0
        %611 = vmatpush2.msra.mxu0 0.0
        %612 = vmatprep.subr.mxu0 0.0
        %613 = vmatpush2.msra.mxu0 0.0
        %614 = vmatprep.subr.mxu0 0.0
        %615 = vmatpush2.msra.mxu0 0.0
        %616 = vmatprep.subr.mxu0 0.0
        %617 = vmatpush2.msra.mxu0 0.0
        %618 = vmatprep.subr.mxu0 0.0
        %619 = vmatpush2.msra.mxu0 0.0
        %620 = vmatprep.subr.mxu0 0.0
        %621 = vmatpush2.msra.mxu0 0.0
        %622 = vmatprep.subr.mxu0 0.0
        %623 = vmatpush2.msra.mxu0 0.0
        %624 = vmatprep.subr.mxu0 0.0
        %625 = vmatpush2.msra.mxu0 0.0
        %626 = vmatprep.subr.mxu0 0.0
        %627 = vmatpush2.msra.mxu0 0.0
        %628 = vmatprep.subr.mxu0 0.0
        %629 = vmatpush2.msra.mxu0 0.0
        %630 = vmatprep.subr.mxu0 0.0
        %631 = vmatpush2.msra.mxu0 0.0
        %632 = vmatprep.subr.mxu0 0.0
        %633 = vmatpush2.msra.mxu0 0.0
        %634 = vmatprep.subr.mxu0 0.0
        %635 = vmatpush2.msra.mxu0 0.0
        %636 = vmatprep.subr.mxu0 0.0
        %637 = vmatpush2.msra.mxu0 0.0
        %638 = vmatprep.subr.mxu0 0.0
        %639 = vmatpush2.msra.mxu0 0.0
        %640 = vmatprep.mubr.f32.mxu0 0.0
        %641 = vmatmul.mubr.f32.gmra.mxu0 %v433
        %v642 = vpop.f32.mrf.mxu0
        %v643 = vadd.f32 0.0, %v642
        %v644 = vpop.f32.mrf.mxu0
        %645 = vmatprep.mubr.f32.mxu0 0.0
        %646 = vmatmul.mubr.f32.gmra.mxu0 %v436
        %v647 = vpop.f32.mrf.mxu0
        %v648 = vadd.f32 0.0, %v647
        %v649 = vpop.f32.mrf.mxu0
        %650 = vmatprep.mubr.f32.mxu0 0.0
        %651 = vmatmul.mubr.f32.gmra.mxu0 %v439
        %v652 = vpop.f32.mrf.mxu0
        %v653 = vadd.f32 0.0, %v652
        %v654 = vpop.f32.mrf.mxu0
        %655 = vmatprep.mubr.f32.mxu0 0.0
        %656 = vmatmul.mubr.f32.gmra.mxu0 %v442
        %v657 = vpop.f32.mrf.mxu0
        %v658 = vadd.f32 0.0, %v657
        %v659 = vpop.f32.mrf.mxu0
        %660 = vmatprep.mubr.f32.mxu0 0.0
        %661 = vmatmul.mubr.f32.gmra.mxu0 %v445
        %v662 = vpop.f32.mrf.mxu0
        %v663 = vadd.f32 0.0, %v662
        %v664 = vpop.f32.mrf.mxu0
        %665 = vmatprep.mubr.f32.mxu0 0.0
        %666 = vmatmul.mubr.f32.gmra.mxu0 %v448
        %v667 = vpop.f32.mrf.mxu0
        %v668 = vadd.f32 0.0, %v667
        %v669 = vpop.f32.mrf.mxu0
        %670 = vmatprep.mubr.f32.mxu0 0.0
        %671 = vmatmul.mubr.f32.gmra.mxu0 %v451
        %v672 = vpop.f32.mrf.mxu0
        %v673 = vadd.f32 0.0, %v672
        %v674 = vpop.f32.mrf.mxu0
        %675 = vmatprep.mubr.f32.mxu0 0.0
        %676 = vmatmul.mubr.f32.gmra.mxu0 %v454
        %v677 = vpop.f32.mrf.mxu0
        %v678 = vadd.f32 0.0, %v677
        %v679 = vpop.f32.mrf.mxu0
        %680 = vmatprep.mubr.f32.mxu0 0.0
        %681 = vmatmul.mubr.f32.gmra.mxu0 %v457
        %v682 = vpop.f32.mrf.mxu0
        %v683 = vadd.f32 0.0, %v682
        %v684 = vpop.f32.mrf.mxu0
        %685 = vmatprep.mubr.f32.mxu0 0.0
        %686 = vmatmul.mubr.f32.gmra.mxu0 %v460
        %v687 = vpop.f32.mrf.mxu0
        %v688 = vadd.f32 0.0, %v687
        %v689 = vpop.f32.mrf.mxu0
        %690 = vmatprep.mubr.f32.mxu0 0.0
        %691 = vmatmul.mubr.f32.gmra.mxu0 %v463
        %v692 = vpop.f32.mrf.mxu0
        %v693 = vadd.f32 0.0, %v692
        %v694 = vpop.f32.mrf.mxu0
        %695 = vmatprep.mubr.f32.mxu0 0.0
        %696 = vmatmul.mubr.f32.gmra.mxu0 %v466
        %v697 = vpop.f32.mrf.mxu0
        %v698 = vadd.f32 0.0, %v697
        %v699 = vpop.f32.mrf.mxu0
        %700 = vmatprep.mubr.f32.mxu0 0.0
        %701 = vmatmul.mubr.f32.gmra.mxu0 %v469
        %v702 = vpop.f32.mrf.mxu0
        %v703 = vadd.f32 0.0, %v702
        %v704 = vpop.f32.mrf.mxu0
        %705 = vmatprep.mubr.f32.mxu0 0.0
        %706 = vmatmul.mubr.f32.gmra.mxu0 %v472
        %v707 = vpop.f32.mrf.mxu0
        %v708 = vadd.f32 0.0, %v707
        %v709 = vpop.f32.mrf.mxu0
        %710 = vmatprep.mubr.f32.mxu0 0.0
        %711 = vmatmul.mubr.f32.gmra.mxu0 %v475
        %v712 = vpop.f32.mrf.mxu0
        %v713 = vadd.f32 0.0, %v712
        %v714 = vpop.f32.mrf.mxu0
        %715 = vmatprep.mubr.f32.mxu0 0.0
        %716 = vmatmul.mubr.f32.gmra.mxu0 %v478
        %v717 = vpop.f32.mrf.mxu0
        %v718 = vadd.f32 0.0, %v717
        %v719 = vpop.f32.mrf.mxu0
        %720 = vmatprep.mubr.f32.mxu0 0.0
        %721 = vmatmul.mubr.f32.gmra.mxu0 %v481
        %v722 = vpop.f32.mrf.mxu0
        %v723 = vadd.f32 0.0, %v722
        %v724 = vpop.f32.mrf.mxu0
        %725 = vmatprep.mubr.f32.mxu0 0.0
        %726 = vmatmul.mubr.f32.gmra.mxu0 %v484
        %v727 = vpop.f32.mrf.mxu0
        %v728 = vadd.f32 0.0, %v727
        %v729 = vpop.f32.mrf.mxu0
        %730 = vmatprep.mubr.f32.mxu0 0.0
        %731 = vmatmul.mubr.f32.gmra.mxu0 %v487
        %v732 = vpop.f32.mrf.mxu0
        %v733 = vadd.f32 0.0, %v732
        %v734 = vpop.f32.mrf.mxu0
        %735 = vmatprep.mubr.f32.mxu0 0.0
        %736 = vmatmul.mubr.f32.gmra.mxu0 %v490
        %v737 = vpop.f32.mrf.mxu0
        %v738 = vadd.f32 0.0, %v737
        %v739 = vpop.f32.mrf.mxu0
        %740 = vmatprep.mubr.f32.mxu0 0.0
        %741 = vmatmul.mubr.f32.gmra.mxu0 %v493
        %v742 = vpop.f32.mrf.mxu0
        %v743 = vadd.f32 0.0, %v742
        %v744 = vpop.f32.mrf.mxu0
        %745 = vmatprep.mubr.f32.mxu0 0.0
        %746 = vmatmul.mubr.f32.gmra.mxu0 %v496
        %v747 = vpop.f32.mrf.mxu0
        %v748 = vadd.f32 0.0, %v747
        %v749 = vpop.f32.mrf.mxu0
        %750 = vmatprep.mubr.f32.mxu0 0.0
        %751 = vmatmul.mubr.f32.gmra.mxu0 %v499
        %v752 = vpop.f32.mrf.mxu0
        %v753 = vadd.f32 0.0, %v752
        %v754 = vpop.f32.mrf.mxu0
        %755 = vmatprep.mubr.f32.mxu0 0.0
        %756 = vmatmul.mubr.f32.gmra.mxu0 %v502
        %v757 = vpop.f32.mrf.mxu0
        %v758 = vadd.f32 0.0, %v757
        %v759 = vpop.f32.mrf.mxu0
        %760 = vmatprep.mubr.f32.mxu0 0.0
        %761 = vmatmul.mubr.f32.gmra.mxu0 %v505
        %v762 = vpop.f32.mrf.mxu0
        %v763 = vadd.f32 0.0, %v762
        %v764 = vpop.f32.mrf.mxu0
        %765 = vmatprep.mubr.f32.mxu0 0.0
        %766 = vmatmul.mubr.f32.gmra.mxu0 %v508
        %v767 = vpop.f32.mrf.mxu0
        %v768 = vadd.f32 0.0, %v767
        %v769 = vpop.f32.mrf.mxu0
        %770 = vmatprep.mubr.f32.mxu0 0.0
        %771 = vmatmul.mubr.f32.gmra.mxu0 %v511
        %v772 = vpop.f32.mrf.mxu0
        %v773 = vadd.f32 0.0, %v772
        %v774 = vpop.f32.mrf.mxu0
        %775 = vmatprep.mubr.f32.mxu0 0.0
        %776 = vmatmul.mubr.f32.gmra.mxu0 %v514
        %v777 = vpop.f32.mrf.mxu0
        %v778 = vadd.f32 0.0, %v777
        %v779 = vpop.f32.mrf.mxu0
        %780 = vmatprep.mubr.f32.mxu0 0.0
        %781 = vmatmul.mubr.f32.gmra.mxu0 %v517
        %v782 = vpop.f32.mrf.mxu0
        %v783 = vadd.f32 0.0, %v782
        %v784 = vpop.f32.mrf.mxu0
        %785 = vmatprep.mubr.f32.mxu0 0.0
        %786 = vmatmul.mubr.f32.gmra.mxu0 %v520
        %v787 = vpop.f32.mrf.mxu0
        %v788 = vadd.f32 0.0, %v787
        %v789 = vpop.f32.mrf.mxu0
        %790 = vmatprep.mubr.f32.mxu0 0.0
        %791 = vmatmul.mubr.f32.gmra.mxu0 %v523
        %v792 = vpop.f32.mrf.mxu0
        %v793 = vadd.f32 0.0, %v792
        %v794 = vpop.f32.mrf.mxu0
        %795 = vmatprep.mubr.f32.mxu0 0.0
        %796 = vmatmul.mubr.f32.gmra.mxu0 %v526
        %v797 = vpop.f32.mrf.mxu0
        %v798 = vadd.f32 0.0, %v797
        %v799 = vpop.f32.mrf.mxu0
        %800 = vmatprep.mubr.f32.mxu0 0.0
        %801 = vmatmul.mubr.f32.gmra.mxu0 %v529
        %v802 = vpop.f32.mrf.mxu0
        %v803 = vadd.f32 0.0, %v802
        %v804 = vpop.f32.mrf.mxu0
        %805 = vmatprep.mubr.f32.mxu0 0.0
        %806 = vmatmul.mubr.f32.gmra.mxu0 %v532
        %v807 = vpop.f32.mrf.mxu0
        %v808 = vadd.f32 0.0, %v807
        %v809 = vpop.f32.mrf.mxu0
        %810 = vmatprep.mubr.f32.mxu0 0.0
        %811 = vmatmul.mubr.f32.gmra.mxu0 %v535
        %v812 = vpop.f32.mrf.mxu0
        %v813 = vadd.f32 0.0, %v812
        %v814 = vpop.f32.mrf.mxu0
        %815 = vmatprep.mubr.f32.mxu0 0.0
        %816 = vmatmul.mubr.f32.gmra.mxu0 %v538
        %v817 = vpop.f32.mrf.mxu0
        %v818 = vadd.f32 0.0, %v817
        %v819 = vpop.f32.mrf.mxu0
        %820 = vmatprep.mubr.f32.mxu0 0.0
        %821 = vmatmul.mubr.f32.gmra.mxu0 %v541
        %v822 = vpop.f32.mrf.mxu0
        %v823 = vadd.f32 0.0, %v822
        %v824 = vpop.f32.mrf.mxu0
        %825 = vmatprep.mubr.f32.mxu0 0.0
        %826 = vmatmul.mubr.f32.gmra.mxu0 %v544
        %v827 = vpop.f32.mrf.mxu0
        %v828 = vadd.f32 0.0, %v827
        %v829 = vpop.f32.mrf.mxu0
        %830 = vmatprep.mubr.f32.mxu0 0.0
        %831 = vmatmul.mubr.f32.gmra.mxu0 %v547
        %v832 = vpop.f32.mrf.mxu0
        %v833 = vadd.f32 0.0, %v832
        %v834 = vpop.f32.mrf.mxu0
        %835 = vmatprep.mubr.f32.mxu0 0.0
        %836 = vmatmul.mubr.f32.gmra.mxu0 %v550
        %v837 = vpop.f32.mrf.mxu0
        %v838 = vadd.f32 0.0, %v837
        %v839 = vpop.f32.mrf.mxu0
        %840 = vmatprep.mubr.f32.mxu0 0.0
        %841 = vmatmul.mubr.f32.gmra.mxu0 %v553
        %v842 = vpop.f32.mrf.mxu0
        %v843 = vadd.f32 0.0, %v842
        %v844 = vpop.f32.mrf.mxu0
        %845 = vmatprep.mubr.f32.mxu0 0.0
        %846 = vmatmul.mubr.f32.gmra.mxu0 %v556
        %v847 = vpop.f32.mrf.mxu0
        %v848 = vadd.f32 0.0, %v847
        %v849 = vpop.f32.mrf.mxu0
        %850 = vmatprep.mubr.f32.mxu0 0.0
        %851 = vmatmul.mubr.f32.gmra.mxu0 %v559
        %v852 = vpop.f32.mrf.mxu0
        %v853 = vadd.f32 0.0, %v852
        %v854 = vpop.f32.mrf.mxu0
        %855 = vmatprep.mubr.f32.mxu0 0.0
        %856 = vmatmul.mubr.f32.gmra.mxu0 %v562
        %v857 = vpop.f32.mrf.mxu0
        %v858 = vadd.f32 0.0, %v857
        %v859 = vpop.f32.mrf.mxu0
        %860 = vmatprep.mubr.f32.mxu0 0.0
        %861 = vmatmul.mubr.f32.gmra.mxu0 %v565
        %v862 = vpop.f32.mrf.mxu0
        %v863 = vadd.f32 0.0, %v862
        %v864 = vpop.f32.mrf.mxu0
        %865 = vmatprep.mubr.f32.mxu0 0.0
        %866 = vmatmul.mubr.f32.gmra.mxu0 %v568
        %v867 = vpop.f32.mrf.mxu0
        %v868 = vadd.f32 0.0, %v867
        %v869 = vpop.f32.mrf.mxu0
        %870 = vmatprep.mubr.f32.mxu0 0.0
        %871 = vmatmul.mubr.f32.gmra.mxu0 %v571
        %v872 = vpop.f32.mrf.mxu0
        %v873 = vadd.f32 0.0, %v872
        %v874 = vpop.f32.mrf.mxu0
        %875 = vmatprep.mubr.f32.mxu0 0.0
        %876 = vmatmul.mubr.f32.gmra.mxu0 %v574
        %v877 = vpop.f32.mrf.mxu0
        %v878 = vadd.f32 0.0, %v877
        %v879 = vpop.f32.mrf.mxu0
        %880 = vdwg.mxu0
        %897 = vrot.lane.b32.xlu0 %v653, 32
        %v898 = vpop.permute.xlu0 %897
        %899 = vrot.lane.b32.xlu0 %v658, 32
        %v900 = vpop.permute.xlu0 %899
        %901 = vrot.lane.b32.xlu0 %v683, 32
        %v902 = vpop.permute.xlu0 %901
        %903 = vrot.lane.b32.xlu0 %v688, 32
        %v904 = vpop.permute.xlu0 %903
        %905 = vrot.lane.b32.xlu0 %v713, 32
        %v906 = vpop.permute.xlu0 %905
        %907 = vrot.lane.b32.xlu0 %v718, 32
        %v908 = vpop.permute.xlu0 %907
        %909 = vrot.lane.b32.xlu0 %v743, 32
        %v910 = vpop.permute.xlu0 %909
        %911 = vrot.lane.b32.xlu0 %v748, 32
        %v912 = vpop.permute.xlu0 %911
        %913 = vrot.lane.b32.xlu0 %v773, 32
        %v914 = vpop.permute.xlu0 %913
        %915 = vrot.lane.b32.xlu0 %v778, 32
        %v916 = vpop.permute.xlu0 %915
        %917 = vrot.lane.b32.xlu0 %v803, 32
        %v918 = vpop.permute.xlu0 %917
        %919 = vrot.lane.b32.xlu0 %v808, 32
        %v920 = vpop.permute.xlu0 %919
        %921 = vrot.lane.b32.xlu0 %v833, 32
        %v922 = vpop.permute.xlu0 %921
        %923 = vrot.lane.b32.xlu0 %v838, 32
        %v924 = vpop.permute.xlu0 %923
        %925 = vrot.lane.b32.xlu0 %v863, 32
        %v926 = vpop.permute.xlu0 %925
        %927 = vrot.lane.b32.xlu0 %v868, 32
        %v928 = vpop.permute.xlu0 %927
        %961 = vrot.lane.b32.xlu0 %v663, 64
        %v962 = vpop.permute.xlu0 %961
        %963 = vrot.lane.b32.xlu0 %v668, 64
        %v964 = vpop.permute.xlu0 %963
        %965 = vrot.lane.b32.xlu0 %v693, 64
        %v966 = vpop.permute.xlu0 %965
        %967 = vrot.lane.b32.xlu0 %v698, 64
        %v968 = vpop.permute.xlu0 %967
        %969 = vrot.lane.b32.xlu0 %v723, 64
        %v970 = vpop.permute.xlu0 %969
        %971 = vrot.lane.b32.xlu0 %v728, 64
        %v972 = vpop.permute.xlu0 %971
        %973 = vrot.lane.b32.xlu0 %v753, 64
        %v974 = vpop.permute.xlu0 %973
        %975 = vrot.lane.b32.xlu0 %v758, 64
        %v976 = vpop.permute.xlu0 %975
        %977 = vrot.lane.b32.xlu0 %v783, 64
        %v978 = vpop.permute.xlu0 %977
        %979 = vrot.lane.b32.xlu0 %v788, 64
        %v980 = vpop.permute.xlu0 %979
        %981 = vrot.lane.b32.xlu0 %v813, 64
        %v982 = vpop.permute.xlu0 %981
        %983 = vrot.lane.b32.xlu0 %v818, 64
        %v984 = vpop.permute.xlu0 %983
        %985 = vrot.lane.b32.xlu0 %v843, 64
        %v986 = vpop.permute.xlu0 %985
        %987 = vrot.lane.b32.xlu0 %v848, 64
        %v988 = vpop.permute.xlu0 %987
        %989 = vrot.lane.b32.xlu0 %v873, 64
        %v990 = vpop.permute.xlu0 %989
        %991 = vrot.lane.b32.xlu0 %v878, 64
        %v992 = vpop.permute.xlu0 %991
        %vm1009 = vcmask 261120
        %v1010 = vsel %vm1009, %v643, %v898
        %v1011 = vsel %vm1009, %v648, %v900
        %v1012 = vsel %vm1009, %v673, %v902
        %v1013 = vsel %vm1009, %v678, %v904
        %v1014 = vsel %vm1009, %v703, %v906
        %v1015 = vsel %vm1009, %v708, %v908
        %v1016 = vsel %vm1009, %v733, %v910
        %v1017 = vsel %vm1009, %v738, %v912
        %v1018 = vsel %vm1009, %v763, %v914
        %v1019 = vsel %vm1009, %v768, %v916
        %v1020 = vsel %vm1009, %v793, %v918
        %v1021 = vsel %vm1009, %v798, %v920
        %v1022 = vsel %vm1009, %v823, %v922
        %v1023 = vsel %vm1009, %v828, %v924
        %v1024 = vsel %vm1009, %v853, %v926
        %v1025 = vsel %vm1009, %v858, %v928
        %vm1026 = vcmask 523264
        %v1027 = vsel %vm1026, %v1010, %v962
        %v1028 = vsel %vm1026, %v1011, %v964
        %v1029 = vsel %vm1026, %v1012, %v966
        %v1030 = vsel %vm1026, %v1013, %v968
        %v1031 = vsel %vm1026, %v1014, %v970
        %v1032 = vsel %vm1026, %v1015, %v972
        %v1033 = vsel %vm1026, %v1016, %v974
        %v1034 = vsel %vm1026, %v1017, %v976
        %v1035 = vsel %vm1026, %v1018, %v978
        %v1036 = vsel %vm1026, %v1019, %v980
        %v1037 = vsel %vm1026, %v1020, %v982
        %v1038 = vsel %vm1026, %v1021, %v984
        %v1039 = vsel %vm1026, %v1022, %v986
        %v1040 = vsel %vm1026, %v1023, %v988
        %v1041 = vsel %vm1026, %v1024, %v990
        %v1042 = vsel %vm1026, %v1025, %v992
        %v1043 = vld [vmem:[%s3] sm:$0xff]
        %v1044 = vld [vmem:[%s3 + $0x8] sm:$0xff]
        %v1045 = vld [vmem:[%s3 + $0x10] sm:$0xff]
        %v1046 = vld [vmem:[%s3 + $0x18] sm:$0xff]
        %v1047 = vld [vmem:[%s4] sm:$0xff]
        %v1048 = vld [vmem:[%s4 + $0x8] sm:$0xff]
        %v1049 = vld [vmem:[%s4 + $0x10] sm:$0xff]
        %v1050 = vld [vmem:[%s4 + $0x18] sm:$0xff]
        %v1052 = vsel %vm431, %v1043, 0
        %v1055 = vsel %vm431, %v1044, 0
        %v1058 = vsel %vm431, %v1045, 0
        %v1061 = vsel %vm431, %v1046, 0
        %1063 = vmatprep.subr.mxu0 0.0
        %1064 = vmatpush1.msra.mxu0 0.0
        %1065 = vmatprep.subr.mxu0 0.0
        %1066 = vmatpush1.msra.mxu0 0.0
        %1067 = vmatprep.subr.mxu0 0.0
        %1068 = vmatpush1.msra.mxu0 0.0
        %1069 = vmatprep.subr.mxu0 0.0
        %1070 = vmatpush1.msra.mxu0 0.0
        %1071 = vmatprep.subr.mxu0 0.0
        %1072 = vmatpush1.msra.mxu0 0.0
        %1073 = vmatprep.subr.mxu0 0.0
        %1074 = vmatpush1.msra.mxu0 0.0
        %1075 = vmatprep.subr.mxu0 0.0
        %1076 = vmatpush1.msra.mxu0 0.0
        %1077 = vmatprep.subr.mxu0 0.0
        %1078 = vmatpush1.msra.mxu0 0.0
        %1079 = vmatprep.subr.mxu0 0.0
        %1080 = vmatpush1.msra.mxu0 0.0
        %1081 = vmatprep.subr.mxu0 0.0
        %1082 = vmatpush1.msra.mxu0 0.0
        %1083 = vmatprep.subr.mxu0 0.0
        %1084 = vmatpush1.msra.mxu0 0.0
        %1085 = vmatprep.subr.mxu0 0.0
        %1086 = vmatpush1.msra.mxu0 0.0
        %1087 = vmatprep.subr.mxu0 0.0
        %1088 = vmatpush1.msra.mxu0 0.0
        %1089 = vmatprep.subr.mxu0 0.0
        %1090 = vmatpush1.msra.mxu0 0.0
        %1091 = vmatprep.subr.mxu0 0.0
        %1092 = vmatpush1.msra.mxu0 %v1028
        %1093 = vmatprep.subr.mxu0 0.0
        %1094 = vmatpush1.msra.mxu0 %v1027
        %1095 = vmatprep.subr.mxu0 0.0
        %1096 = vmatpush2.msra.mxu0 0.0
        %1097 = vmatprep.subr.mxu0 0.0
        %1098 = vmatpush2.msra.mxu0 0.0
        %1099 = vmatprep.subr.mxu0 0.0
        %1100 = vmatpush2.msra.mxu0 0.0
        %1101 = vmatprep.subr.mxu0 0.0
        %1102 = vmatpush2.msra.mxu0 0.0
        %1103 = vmatprep.subr.mxu0 0.0
        %1104 = vmatpush2.msra.mxu0 0.0
        %1105 = vmatprep.subr.mxu0 0.0
        %1106 = vmatpush2.msra.mxu0 0.0
        %1107 = vmatprep.subr.mxu0 0.0
        %1108 = vmatpush2.msra.mxu0 0.0
        %1109 = vmatprep.subr.mxu0 0.0
        %1110 = vmatpush2.msra.mxu0 0.0
        %1111 = vmatprep.subr.mxu0 0.0
        %1112 = vmatpush2.msra.mxu0 0.0
        %1113 = vmatprep.subr.mxu0 0.0
        %1114 = vmatpush2.msra.mxu0 0.0
        %1115 = vmatprep.subr.mxu0 0.0
        %1116 = vmatpush2.msra.mxu0 0.0
        %1117 = vmatprep.subr.mxu0 0.0
        %1118 = vmatpush2.msra.mxu0 0.0
        %1119 = vmatprep.subr.mxu0 0.0
        %1120 = vmatpush2.msra.mxu0 0.0
        %1121 = vmatprep.subr.mxu0 0.0
        %1122 = vmatpush2.msra.mxu0 0.0
        %1123 = vmatprep.subr.mxu0 0.0
        %1124 = vmatpush2.msra.mxu0 0.0
        %1125 = vmatprep.subr.mxu0 0.0
        %1126 = vmatpush2.msra.mxu0 0.0
        %1127 = vmatprep.mubr.f32.mxu0 0.0
        %1128 = vmatmul.mubr.f32.gmra.mxu0 %v1052
        %v1129 = vpop.f32.mrf.mxu0
        %v1130 = vadd.f32 %v1047, %v1129
        %v1131 = vpop.f32.mrf.mxu0
        %1132 = vmatprep.mubr.f32.mxu0 0.0
        %1133 = vmatmul.mubr.f32.gmra.mxu0 %v1055
        %v1134 = vpop.f32.mrf.mxu0
        %v1135 = vadd.f32 %v1048, %v1134
        %v1136 = vpop.f32.mrf.mxu0
        %1137 = vmatprep.mubr.f32.mxu0 0.0
        %1138 = vmatmul.mubr.f32.gmra.mxu0 %v1058
        %v1139 = vpop.f32.mrf.mxu0
        %v1140 = vadd.f32 %v1049, %v1139
        %v1141 = vpop.f32.mrf.mxu0
        %1142 = vmatprep.mubr.f32.mxu0 0.0
        %1143 = vmatmul.mubr.f32.gmra.mxu0 %v1061
        %v1144 = vpop.f32.mrf.mxu0
        %v1145 = vadd.f32 %v1050, %v1144
        %v1146 = vpop.f32.mrf.mxu0
        %1147 = vdwg.mxu0
        %1148 = vmatprep.subr.mxu0 0.0
        %1149 = vmatpush1.msra.mxu0 0.0
        %1150 = vmatprep.subr.mxu0 0.0
        %1151 = vmatpush1.msra.mxu0 0.0
        %1152 = vmatprep.subr.mxu0 0.0
        %1153 = vmatpush1.msra.mxu0 0.0
        %1154 = vmatprep.subr.mxu0 0.0
        %1155 = vmatpush1.msra.mxu0 0.0
        %1156 = vmatprep.subr.mxu0 0.0
        %1157 = vmatpush1.msra.mxu0 0.0
        %1158 = vmatprep.subr.mxu0 0.0
        %1159 = vmatpush1.msra.mxu0 0.0
        %1160 = vmatprep.subr.mxu0 0.0
        %1161 = vmatpush1.msra.mxu0 0.0
        %1162 = vmatprep.subr.mxu0 0.0
        %1163 = vmatpush1.msra.mxu0 0.0
        %1164 = vmatprep.subr.mxu0 0.0
        %1165 = vmatpush1.msra.mxu0 0.0
        %1166 = vmatprep.subr.mxu0 0.0
        %1167 = vmatpush1.msra.mxu0 0.0
        %1168 = vmatprep.subr.mxu0 0.0
        %1169 = vmatpush1.msra.mxu0 0.0
        %1170 = vmatprep.subr.mxu0 0.0
        %1171 = vmatpush1.msra.mxu0 0.0
        %1172 = vmatprep.subr.mxu0 0.0
        %1173 = vmatpush1.msra.mxu0 0.0
        %1174 = vmatprep.subr.mxu0 0.0
        %1175 = vmatpush1.msra.mxu0 0.0
        %1176 = vmatprep.subr.mxu0 0.0
        %1177 = vmatpush1.msra.mxu0 %v1030
        %1178 = vmatprep.subr.mxu0 0.0
        %1179 = vmatpush1.msra.mxu0 %v1029
        %1180 = vmatprep.subr.mxu0 0.0
        %1181 = vmatpush2.msra.mxu0 0.0
        %1182 = vmatprep.subr.mxu0 0.0
        %1183 = vmatpush2.msra.mxu0 0.0
        %1184 = vmatprep.subr.mxu0 0.0
        %1185 = vmatpush2.msra.mxu0 0.0
        %1186 = vmatprep.subr.mxu0 0.0
        %1187 = vmatpush2.msra.mxu0 0.0
        %1188 = vmatprep.subr.mxu0 0.0
        %1189 = vmatpush2.msra.mxu0 0.0
        %1190 = vmatprep.subr.mxu0 0.0
        %1191 = vmatpush2.msra.mxu0 0.0
        %1192 = vmatprep.subr.mxu0 0.0
        %1193 = vmatpush2.msra.mxu0 0.0
        %1194 = vmatprep.subr.mxu0 0.0
        %1195 = vmatpush2.msra.mxu0 0.0
        %1196 = vmatprep.subr.mxu0 0.0
        %1197 = vmatpush2.msra.mxu0 0.0
        %1198 = vmatprep.subr.mxu0 0.0
        %1199 = vmatpush2.msra.mxu0 0.0
        %1200 = vmatprep.subr.mxu0 0.0
        %1201 = vmatpush2.msra.mxu0 0.0
        %1202 = vmatprep.subr.mxu0 0.0
        %1203 = vmatpush2.msra.mxu0 0.0
        %1204 = vmatprep.subr.mxu0 0.0
        %1205 = vmatpush2.msra.mxu0 0.0
        %1206 = vmatprep.subr.mxu0 0.0
        %1207 = vmatpush2.msra.mxu0 0.0
        %1208 = vmatprep.subr.mxu0 0.0
        %1209 = vmatpush2.msra.mxu0 0.0
        %1210 = vmatprep.subr.mxu0 0.0
        %1211 = vmatpush2.msra.mxu0 0.0
        %1212 = vmatprep.mubr.f32.mxu0 0.0
        %1213 = vmatmul.mubr.f32.gmra.mxu0 %v1052
        %v1214 = vpop.f32.mrf.mxu0
        %v1215 = vadd.f32 %v1047, %v1214
        %v1216 = vpop.f32.mrf.mxu0
        %1217 = vmatprep.mubr.f32.mxu0 0.0
        %1218 = vmatmul.mubr.f32.gmra.mxu0 %v1055
        %v1219 = vpop.f32.mrf.mxu0
        %v1220 = vadd.f32 %v1048, %v1219
        %v1221 = vpop.f32.mrf.mxu0
        %1222 = vmatprep.mubr.f32.mxu0 0.0
        %1223 = vmatmul.mubr.f32.gmra.mxu0 %v1058
        %v1224 = vpop.f32.mrf.mxu0
        %v1225 = vadd.f32 %v1049, %v1224
        %v1226 = vpop.f32.mrf.mxu0
        %1227 = vmatprep.mubr.f32.mxu0 0.0
        %1228 = vmatmul.mubr.f32.gmra.mxu0 %v1061
        %v1229 = vpop.f32.mrf.mxu0
        %v1230 = vadd.f32 %v1050, %v1229
        %v1231 = vpop.f32.mrf.mxu0
        %1232 = vdwg.mxu0
        %1233 = vmatprep.subr.mxu0 0.0
        %1234 = vmatpush1.msra.mxu0 0.0
        %1235 = vmatprep.subr.mxu0 0.0
        %1236 = vmatpush1.msra.mxu0 0.0
        %1237 = vmatprep.subr.mxu0 0.0
        %1238 = vmatpush1.msra.mxu0 0.0
        %1239 = vmatprep.subr.mxu0 0.0
        %1240 = vmatpush1.msra.mxu0 0.0
        %1241 = vmatprep.subr.mxu0 0.0
        %1242 = vmatpush1.msra.mxu0 0.0
        %1243 = vmatprep.subr.mxu0 0.0
        %1244 = vmatpush1.msra.mxu0 0.0
        %1245 = vmatprep.subr.mxu0 0.0
        %1246 = vmatpush1.msra.mxu0 0.0
        %1247 = vmatprep.subr.mxu0 0.0
        %1248 = vmatpush1.msra.mxu0 0.0
        %1249 = vmatprep.subr.mxu0 0.0
        %1250 = vmatpush1.msra.mxu0 0.0
        %1251 = vmatprep.subr.mxu0 0.0
        %1252 = vmatpush1.msra.mxu0 0.0
        %1253 = vmatprep.subr.mxu0 0.0
        %1254 = vmatpush1.msra.mxu0 0.0
        %1255 = vmatprep.subr.mxu0 0.0
        %1256 = vmatpush1.msra.mxu0 0.0
        %1257 = vmatprep.subr.mxu0 0.0
        %1258 = vmatpush1.msra.mxu0 0.0
        %1259 = vmatprep.subr.mxu0 0.0
        %1260 = vmatpush1.msra.mxu0 0.0
        %1261 = vmatprep.subr.mxu0 0.0
        %1262 = vmatpush1.msra.mxu0 %v1032
        %1263 = vmatprep.subr.mxu0 0.0
        %1264 = vmatpush1.msra.mxu0 %v1031
        %1265 = vmatprep.subr.mxu0 0.0
        %1266 = vmatpush2.msra.mxu0 0.0
        %1267 = vmatprep.subr.mxu0 0.0
        %1268 = vmatpush2.msra.mxu0 0.0
        %1269 = vmatprep.subr.mxu0 0.0
        %1270 = vmatpush2.msra.mxu0 0.0
        %1271 = vmatprep.subr.mxu0 0.0
        %1272 = vmatpush2.msra.mxu0 0.0
        %1273 = vmatprep.subr.mxu0 0.0
        %1274 = vmatpush2.msra.mxu0 0.0
        %1275 = vmatprep.subr.mxu0 0.0
        %1276 = vmatpush2.msra.mxu0 0.0
        %1277 = vmatprep.subr.mxu0 0.0
        %1278 = vmatpush2.msra.mxu0 0.0
        %1279 = vmatprep.subr.mxu0 0.0
        %1280 = vmatpush2.msra.mxu0 0.0
        %1281 = vmatprep.subr.mxu0 0.0
        %1282 = vmatpush2.msra.mxu0 0.0
        %1283 = vmatprep.subr.mxu0 0.0
        %1284 = vmatpush2.msra.mxu0 0.0
        %1285 = vmatprep.subr.mxu0 0.0
        %1286 = vmatpush2.msra.mxu0 0.0
        %1287 = vmatprep.subr.mxu0 0.0
        %1288 = vmatpush2.msra.mxu0 0.0
        %1289 = vmatprep.subr.mxu0 0.0
        %1290 = vmatpush2.msra.mxu0 0.0
        %1291 = vmatprep.subr.mxu0 0.0
        %1292 = vmatpush2.msra.mxu0 0.0
        %1293 = vmatprep.subr.mxu0 0.0
        %1294 = vmatpush2.msra.mxu0 0.0
        %1295 = vmatprep.subr.mxu0 0.0
        %1296 = vmatpush2.msra.mxu0 0.0
        %1297 = vmatprep.mubr.f32.mxu0 0.0
        %1298 = vmatmul.mubr.f32.gmra.mxu0 %v1052
        %v1299 = vpop.f32.mrf.mxu0
        %v1300 = vadd.f32 %v1047, %v1299
        %v1301 = vpop.f32.mrf.mxu0
        %1302 = vmatprep.mubr.f32.mxu0 0.0
        %1303 = vmatmul.mubr.f32.gmra.mxu0 %v1055
        %v1304 = vpop.f32.mrf.mxu0
        %v1305 = vadd.f32 %v1048, %v1304
        %v1306 = vpop.f32.mrf.mxu0
        %1307 = vmatprep.mubr.f32.mxu0 0.0
        %1308 = vmatmul.mubr.f32.gmra.mxu0 %v1058
        %v1309 = vpop.f32.mrf.mxu0
        %v1310 = vadd.f32 %v1049, %v1309
        %v1311 = vpop.f32.mrf.mxu0
        %1312 = vmatprep.mubr.f32.mxu0 0.0
        %1313 = vmatmul.mubr.f32.gmra.mxu0 %v1061
        %v1314 = vpop.f32.mrf.mxu0
        %v1315 = vadd.f32 %v1050, %v1314
        %v1316 = vpop.f32.mrf.mxu0
        %1317 = vdwg.mxu0
        %1318 = vmatprep.subr.mxu0 0.0
        %1319 = vmatpush1.msra.mxu0 0.0
        %1320 = vmatprep.subr.mxu0 0.0
        %1321 = vmatpush1.msra.mxu0 0.0
        %1322 = vmatprep.subr.mxu0 0.0
        %1323 = vmatpush1.msra.mxu0 0.0
        %1324 = vmatprep.subr.mxu0 0.0
        %1325 = vmatpush1.msra.mxu0 0.0
        %1326 = vmatprep.subr.mxu0 0.0
        %1327 = vmatpush1.msra.mxu0 0.0
        %1328 = vmatprep.subr.mxu0 0.0
        %1329 = vmatpush1.msra.mxu0 0.0
        %1330 = vmatprep.subr.mxu0 0.0
        %1331 = vmatpush1.msra.mxu0 0.0
        %1332 = vmatprep.subr.mxu0 0.0
        %1333 = vmatpush1.msra.mxu0 0.0
        %1334 = vmatprep.subr.mxu0 0.0
        %1335 = vmatpush1.msra.mxu0 0.0
        %1336 = vmatprep.subr.mxu0 0.0
        %1337 = vmatpush1.msra.mxu0 0.0
        %1338 = vmatprep.subr.mxu0 0.0
        %1339 = vmatpush1.msra.mxu0 0.0
        %1340 = vmatprep.subr.mxu0 0.0
        %1341 = vmatpush1.msra.mxu0 0.0
        %1342 = vmatprep.subr.mxu0 0.0
        %1343 = vmatpush1.msra.mxu0 0.0
        %1344 = vmatprep.subr.mxu0 0.0
        %1345 = vmatpush1.msra.mxu0 0.0
        %1346 = vmatprep.subr.mxu0 0.0
        %1347 = vmatpush1.msra.mxu0 %v1034
        %1348 = vmatprep.subr.mxu0 0.0
        %1349 = vmatpush1.msra.mxu0 %v1033
        %1350 = vmatprep.subr.mxu0 0.0
        %1351 = vmatpush2.msra.mxu0 0.0
        %1352 = vmatprep.subr.mxu0 0.0
        %1353 = vmatpush2.msra.mxu0 0.0
        %1354 = vmatprep.subr.mxu0 0.0
        %1355 = vmatpush2.msra.mxu0 0.0
        %1356 = vmatprep.subr.mxu0 0.0
        %1357 = vmatpush2.msra.mxu0 0.0
        %1358 = vmatprep.subr.mxu0 0.0
        %1359 = vmatpush2.msra.mxu0 0.0
        %1360 = vmatprep.subr.mxu0 0.0
        %1361 = vmatpush2.msra.mxu0 0.0
        %1362 = vmatprep.subr.mxu0 0.0
        %1363 = vmatpush2.msra.mxu0 0.0
        %1364 = vmatprep.subr.mxu0 0.0
        %1365 = vmatpush2.msra.mxu0 0.0
        %1366 = vmatprep.subr.mxu0 0.0
        %1367 = vmatpush2.msra.mxu0 0.0
        %1368 = vmatprep.subr.mxu0 0.0
        %1369 = vmatpush2.msra.mxu0 0.0
        %1370 = vmatprep.subr.mxu0 0.0
        %1371 = vmatpush2.msra.mxu0 0.0
        %1372 = vmatprep.subr.mxu0 0.0
        %1373 = vmatpush2.msra.mxu0 0.0
        %1374 = vmatprep.subr.mxu0 0.0
        %1375 = vmatpush2.msra.mxu0 0.0
        %1376 = vmatprep.subr.mxu0 0.0
        %1377 = vmatpush2.msra.mxu0 0.0
        %1378 = vmatprep.subr.mxu0 0.0
        %1379 = vmatpush2.msra.mxu0 0.0
        %1380 = vmatprep.subr.mxu0 0.0
        %1381 = vmatpush2.msra.mxu0 0.0
        %1382 = vmatprep.mubr.f32.mxu0 0.0
        %1383 = vmatmul.mubr.f32.gmra.mxu0 %v1052
        %v1384 = vpop.f32.mrf.mxu0
        %v1385 = vadd.f32 %v1047, %v1384
        %v1386 = vpop.f32.mrf.mxu0
        %1387 = vmatprep.mubr.f32.mxu0 0.0
        %1388 = vmatmul.mubr.f32.gmra.mxu0 %v1055
        %v1389 = vpop.f32.mrf.mxu0
        %v1390 = vadd.f32 %v1048, %v1389
        %v1391 = vpop.f32.mrf.mxu0
        %1392 = vmatprep.mubr.f32.mxu0 0.0
        %1393 = vmatmul.mubr.f32.gmra.mxu0 %v1058
        %v1394 = vpop.f32.mrf.mxu0
        %v1395 = vadd.f32 %v1049, %v1394
        %v1396 = vpop.f32.mrf.mxu0
        %1397 = vmatprep.mubr.f32.mxu0 0.0
        %1398 = vmatmul.mubr.f32.gmra.mxu0 %v1061
        %v1399 = vpop.f32.mrf.mxu0
        %v1400 = vadd.f32 %v1050, %v1399
        %v1401 = vpop.f32.mrf.mxu0
        %1402 = vdwg.mxu0
        %1403 = vmatprep.subr.mxu0 0.0
        %1404 = vmatpush1.msra.mxu0 0.0
        %1405 = vmatprep.subr.mxu0 0.0
        %1406 = vmatpush1.msra.mxu0 0.0
        %1407 = vmatprep.subr.mxu0 0.0
        %1408 = vmatpush1.msra.mxu0 0.0
        %1409 = vmatprep.subr.mxu0 0.0
        %1410 = vmatpush1.msra.mxu0 0.0
        %1411 = vmatprep.subr.mxu0 0.0
        %1412 = vmatpush1.msra.mxu0 0.0
        %1413 = vmatprep.subr.mxu0 0.0
        %1414 = vmatpush1.msra.mxu0 0.0
        %1415 = vmatprep.subr.mxu0 0.0
        %1416 = vmatpush1.msra.mxu0 0.0
        %1417 = vmatprep.subr.mxu0 0.0
        %1418 = vmatpush1.msra.mxu0 0.0
        %1419 = vmatprep.subr.mxu0 0.0
        %1420 = vmatpush1.msra.mxu0 0.0
        %1421 = vmatprep.subr.mxu0 0.0
        %1422 = vmatpush1.msra.mxu0 0.0
        %1423 = vmatprep.subr.mxu0 0.0
        %1424 = vmatpush1.msra.mxu0 0.0
        %1425 = vmatprep.subr.mxu0 0.0
        %1426 = vmatpush1.msra.mxu0 0.0
        %1427 = vmatprep.subr.mxu0 0.0
        %1428 = vmatpush1.msra.mxu0 0.0
        %1429 = vmatprep.subr.mxu0 0.0
        %1430 = vmatpush1.msra.mxu0 0.0
        %1431 = vmatprep.subr.mxu0 0.0
        %1432 = vmatpush1.msra.mxu0 %v1036
        %1433 = vmatprep.subr.mxu0 0.0
        %1434 = vmatpush1.msra.mxu0 %v1035
        %1435 = vmatprep.subr.mxu0 0.0
        %1436 = vmatpush2.msra.mxu0 0.0
        %1437 = vmatprep.subr.mxu0 0.0
        %1438 = vmatpush2.msra.mxu0 0.0
        %1439 = vmatprep.subr.mxu0 0.0
        %1440 = vmatpush2.msra.mxu0 0.0
        %1441 = vmatprep.subr.mxu0 0.0
        %1442 = vmatpush2.msra.mxu0 0.0
        %1443 = vmatprep.subr.mxu0 0.0
        %1444 = vmatpush2.msra.mxu0 0.0
        %1445 = vmatprep.subr.mxu0 0.0
        %1446 = vmatpush2.msra.mxu0 0.0
        %1447 = vmatprep.subr.mxu0 0.0
        %1448 = vmatpush2.msra.mxu0 0.0
        %1449 = vmatprep.subr.mxu0 0.0
        %1450 = vmatpush2.msra.mxu0 0.0
        %1451 = vmatprep.subr.mxu0 0.0
        %1452 = vmatpush2.msra.mxu0 0.0
        %1453 = vmatprep.subr.mxu0 0.0
        %1454 = vmatpush2.msra.mxu0 0.0
        %1455 = vmatprep.subr.mxu0 0.0
        %1456 = vmatpush2.msra.mxu0 0.0
        %1457 = vmatprep.subr.mxu0 0.0
        %1458 = vmatpush2.msra.mxu0 0.0
        %1459 = vmatprep.subr.mxu0 0.0
        %1460 = vmatpush2.msra.mxu0 0.0
        %1461 = vmatprep.subr.mxu0 0.0
        %1462 = vmatpush2.msra.mxu0 0.0
        %1463 = vmatprep.subr.mxu0 0.0
        %1464 = vmatpush2.msra.mxu0 0.0
        %1465 = vmatprep.subr.mxu0 0.0
        %1466 = vmatpush2.msra.mxu0 0.0
        %1467 = vmatprep.mubr.f32.mxu0 0.0
        %1468 = vmatmul.mubr.f32.gmra.mxu0 %v1052
        %v1469 = vpop.f32.mrf.mxu0
        %v1470 = vadd.f32 %v1047, %v1469
        %v1471 = vpop.f32.mrf.mxu0
        %1472 = vmatprep.mubr.f32.mxu0 0.0
        %1473 = vmatmul.mubr.f32.gmra.mxu0 %v1055
        %v1474 = vpop.f32.mrf.mxu0
        %v1475 = vadd.f32 %v1048, %v1474
        %v1476 = vpop.f32.mrf.mxu0
        %1477 = vmatprep.mubr.f32.mxu0 0.0
        %1478 = vmatmul.mubr.f32.gmra.mxu0 %v1058
        %v1479 = vpop.f32.mrf.mxu0
        %v1480 = vadd.f32 %v1049, %v1479
        %v1481 = vpop.f32.mrf.mxu0
        %1482 = vmatprep.mubr.f32.mxu0 0.0
        %1483 = vmatmul.mubr.f32.gmra.mxu0 %v1061
        %v1484 = vpop.f32.mrf.mxu0
        %v1485 = vadd.f32 %v1050, %v1484
        %v1486 = vpop.f32.mrf.mxu0
        %1487 = vdwg.mxu0
        %1488 = vmatprep.subr.mxu0 0.0
        %1489 = vmatpush1.msra.mxu0 0.0
        %1490 = vmatprep.subr.mxu0 0.0
        %1491 = vmatpush1.msra.mxu0 0.0
        %1492 = vmatprep.subr.mxu0 0.0
        %1493 = vmatpush1.msra.mxu0 0.0
        %1494 = vmatprep.subr.mxu0 0.0
        %1495 = vmatpush1.msra.mxu0 0.0
        %1496 = vmatprep.subr.mxu0 0.0
        %1497 = vmatpush1.msra.mxu0 0.0
        %1498 = vmatprep.subr.mxu0 0.0
        %1499 = vmatpush1.msra.mxu0 0.0
        %1500 = vmatprep.subr.mxu0 0.0
        %1501 = vmatpush1.msra.mxu0 0.0
        %1502 = vmatprep.subr.mxu0 0.0
        %1503 = vmatpush1.msra.mxu0 0.0
        %1504 = vmatprep.subr.mxu0 0.0
        %1505 = vmatpush1.msra.mxu0 0.0
        %1506 = vmatprep.subr.mxu0 0.0
        %1507 = vmatpush1.msra.mxu0 0.0
        %1508 = vmatprep.subr.mxu0 0.0
        %1509 = vmatpush1.msra.mxu0 0.0
        %1510 = vmatprep.subr.mxu0 0.0
        %1511 = vmatpush1.msra.mxu0 0.0
        %1512 = vmatprep.subr.mxu0 0.0
        %1513 = vmatpush1.msra.mxu0 0.0
        %1514 = vmatprep.subr.mxu0 0.0
        %1515 = vmatpush1.msra.mxu0 0.0
        %1516 = vmatprep.subr.mxu0 0.0
        %1517 = vmatpush1.msra.mxu0 %v1038
        %1518 = vmatprep.subr.mxu0 0.0
        %1519 = vmatpush1.msra.mxu0 %v1037
        %1520 = vmatprep.subr.mxu0 0.0
        %1521 = vmatpush2.msra.mxu0 0.0
        %1522 = vmatprep.subr.mxu0 0.0
        %1523 = vmatpush2.msra.mxu0 0.0
        %1524 = vmatprep.subr.mxu0 0.0
        %1525 = vmatpush2.msra.mxu0 0.0
        %1526 = vmatprep.subr.mxu0 0.0
        %1527 = vmatpush2.msra.mxu0 0.0
        %1528 = vmatprep.subr.mxu0 0.0
        %1529 = vmatpush2.msra.mxu0 0.0
        %1530 = vmatprep.subr.mxu0 0.0
        %1531 = vmatpush2.msra.mxu0 0.0
        %1532 = vmatprep.subr.mxu0 0.0
        %1533 = vmatpush2.msra.mxu0 0.0
        %1534 = vmatprep.subr.mxu0 0.0
        %1535 = vmatpush2.msra.mxu0 0.0
        %1536 = vmatprep.subr.mxu0 0.0
        %1537 = vmatpush2.msra.mxu0 0.0
        %1538 = vmatprep.subr.mxu0 0.0
        %1539 = vmatpush2.msra.mxu0 0.0
        %1540 = vmatprep.subr.mxu0 0.0
        %1541 = vmatpush2.msra.mxu0 0.0
        %1542 = vmatprep.subr.mxu0 0.0
        %1543 = vmatpush2.msra.mxu0 0.0
        %1544 = vmatprep.subr.mxu0 0.0
        %1545 = vmatpush2.msra.mxu0 0.0
        %1546 = vmatprep.subr.mxu0 0.0
        %1547 = vmatpush2.msra.mxu0 0.0
        %1548 = vmatprep.subr.mxu0 0.0
        %1549 = vmatpush2.msra.mxu0 0.0
        %1550 = vmatprep.subr.mxu0 0.0
        %1551 = vmatpush2.msra.mxu0 0.0
        %1552 = vmatprep.mubr.f32.mxu0 0.0
        %1553 = vmatmul.mubr.f32.gmra.mxu0 %v1052
        %v1554 = vpop.f32.mrf.mxu0
        %v1555 = vadd.f32 %v1047, %v1554
        %v1556 = vpop.f32.mrf.mxu0
        %1557 = vmatprep.mubr.f32.mxu0 0.0
        %1558 = vmatmul.mubr.f32.gmra.mxu0 %v1055
        %v1559 = vpop.f32.mrf.mxu0
        %v1560 = vadd.f32 %v1048, %v1559
        %v1561 = vpop.f32.mrf.mxu0
        %1562 = vmatprep.mubr.f32.mxu0 0.0
        %1563 = vmatmul.mubr.f32.gmra.mxu0 %v1058
        %v1564 = vpop.f32.mrf.mxu0
        %v1565 = vadd.f32 %v1049, %v1564
        %v1566 = vpop.f32.mrf.mxu0
        %1567 = vmatprep.mubr.f32.mxu0 0.0
        %1568 = vmatmul.mubr.f32.gmra.mxu0 %v1061
        %v1569 = vpop.f32.mrf.mxu0
        %v1570 = vadd.f32 %v1050, %v1569
        %v1571 = vpop.f32.mrf.mxu0
        %1572 = vdwg.mxu0
        %1573 = vmatprep.subr.mxu0 0.0
        %1574 = vmatpush1.msra.mxu0 0.0
        %1575 = vmatprep.subr.mxu0 0.0
        %1576 = vmatpush1.msra.mxu0 0.0
        %1577 = vmatprep.subr.mxu0 0.0
        %1578 = vmatpush1.msra.mxu0 0.0
        %1579 = vmatprep.subr.mxu0 0.0
        %1580 = vmatpush1.msra.mxu0 0.0
        %1581 = vmatprep.subr.mxu0 0.0
        %1582 = vmatpush1.msra.mxu0 0.0
        %1583 = vmatprep.subr.mxu0 0.0
        %1584 = vmatpush1.msra.mxu0 0.0
        %1585 = vmatprep.subr.mxu0 0.0
        %1586 = vmatpush1.msra.mxu0 0.0
        %1587 = vmatprep.subr.mxu0 0.0
        %1588 = vmatpush1.msra.mxu0 0.0
        %1589 = vmatprep.subr.mxu0 0.0
        %1590 = vmatpush1.msra.mxu0 0.0
        %1591 = vmatprep.subr.mxu0 0.0
        %1592 = vmatpush1.msra.mxu0 0.0
        %1593 = vmatprep.subr.mxu0 0.0
        %1594 = vmatpush1.msra.mxu0 0.0
        %1595 = vmatprep.subr.mxu0 0.0
        %1596 = vmatpush1.msra.mxu0 0.0
        %1597 = vmatprep.subr.mxu0 0.0
        %1598 = vmatpush1.msra.mxu0 0.0
        %1599 = vmatprep.subr.mxu0 0.0
        %1600 = vmatpush1.msra.mxu0 0.0
        %1601 = vmatprep.subr.mxu0 0.0
        %1602 = vmatpush1.msra.mxu0 %v1040
        %1603 = vmatprep.subr.mxu0 0.0
        %1604 = vmatpush1.msra.mxu0 %v1039
        %1605 = vmatprep.subr.mxu0 0.0
        %1606 = vmatpush2.msra.mxu0 0.0
        %1607 = vmatprep.subr.mxu0 0.0
        %1608 = vmatpush2.msra.mxu0 0.0
        %1609 = vmatprep.subr.mxu0 0.0
        %1610 = vmatpush2.msra.mxu0 0.0
        %1611 = vmatprep.subr.mxu0 0.0
        %1612 = vmatpush2.msra.mxu0 0.0
        %1613 = vmatprep.subr.mxu0 0.0
        %1614 = vmatpush2.msra.mxu0 0.0
        %1615 = vmatprep.subr.mxu0 0.0
        %1616 = vmatpush2.msra.mxu0 0.0
        %1617 = vmatprep.subr.mxu0 0.0
        %1618 = vmatpush2.msra.mxu0 0.0
        %1619 = vmatprep.subr.mxu0 0.0
        %1620 = vmatpush2.msra.mxu0 0.0
        %1621 = vmatprep.subr.mxu0 0.0
        %1622 = vmatpush2.msra.mxu0 0.0
        %1623 = vmatprep.subr.mxu0 0.0
        %1624 = vmatpush2.msra.mxu0 0.0
        %1625 = vmatprep.subr.mxu0 0.0
        %1626 = vmatpush2.msra.mxu0 0.0
        %1627 = vmatprep.subr.mxu0 0.0
        %1628 = vmatpush2.msra.mxu0 0.0
        %1629 = vmatprep.subr.mxu0 0.0
        %1630 = vmatpush2.msra.mxu0 0.0
        %1631 = vmatprep.subr.mxu0 0.0
        %1632 = vmatpush2.msra.mxu0 0.0
        %1633 = vmatprep.subr.mxu0 0.0
        %1634 = vmatpush2.msra.mxu0 0.0
        %1635 = vmatprep.subr.mxu0 0.0
        %1636 = vmatpush2.msra.mxu0 0.0
        %1637 = vmatprep.mubr.f32.mxu0 0.0
        %1638 = vmatmul.mubr.f32.gmra.mxu0 %v1052
        %v1639 = vpop.f32.mrf.mxu0
        %v1640 = vadd.f32 %v1047, %v1639
        %v1641 = vpop.f32.mrf.mxu0
        %1642 = vmatprep.mubr.f32.mxu0 0.0
        %1643 = vmatmul.mubr.f32.gmra.mxu0 %v1055
        %v1644 = vpop.f32.mrf.mxu0
        %v1645 = vadd.f32 %v1048, %v1644
        %v1646 = vpop.f32.mrf.mxu0
        %1647 = vmatprep.mubr.f32.mxu0 0.0
        %1648 = vmatmul.mubr.f32.gmra.mxu0 %v1058
        %v1649 = vpop.f32.mrf.mxu0
        %v1650 = vadd.f32 %v1049, %v1649
        %v1651 = vpop.f32.mrf.mxu0
        %1652 = vmatprep.mubr.f32.mxu0 0.0
        %1653 = vmatmul.mubr.f32.gmra.mxu0 %v1061
        %v1654 = vpop.f32.mrf.mxu0
        %v1655 = vadd.f32 %v1050, %v1654
        %v1656 = vpop.f32.mrf.mxu0
        %1657 = vdwg.mxu0
        %1658 = vmatprep.subr.mxu0 0.0
        %1659 = vmatpush1.msra.mxu0 0.0
        %1660 = vmatprep.subr.mxu0 0.0
        %1661 = vmatpush1.msra.mxu0 0.0
        %1662 = vmatprep.subr.mxu0 0.0
        %1663 = vmatpush1.msra.mxu0 0.0
        %1664 = vmatprep.subr.mxu0 0.0
        %1665 = vmatpush1.msra.mxu0 0.0
        %1666 = vmatprep.subr.mxu0 0.0
        %1667 = vmatpush1.msra.mxu0 0.0
        %1668 = vmatprep.subr.mxu0 0.0
        %1669 = vmatpush1.msra.mxu0 0.0
        %1670 = vmatprep.subr.mxu0 0.0
        %1671 = vmatpush1.msra.mxu0 0.0
        %1672 = vmatprep.subr.mxu0 0.0
        %1673 = vmatpush1.msra.mxu0 0.0
        %1674 = vmatprep.subr.mxu0 0.0
        %1675 = vmatpush1.msra.mxu0 0.0
        %1676 = vmatprep.subr.mxu0 0.0
        %1677 = vmatpush1.msra.mxu0 0.0
        %1678 = vmatprep.subr.mxu0 0.0
        %1679 = vmatpush1.msra.mxu0 0.0
        %1680 = vmatprep.subr.mxu0 0.0
        %1681 = vmatpush1.msra.mxu0 0.0
        %1682 = vmatprep.subr.mxu0 0.0
        %1683 = vmatpush1.msra.mxu0 0.0
        %1684 = vmatprep.subr.mxu0 0.0
        %1685 = vmatpush1.msra.mxu0 0.0
        %1686 = vmatprep.subr.mxu0 0.0
        %1687 = vmatpush1.msra.mxu0 %v1042
        %1688 = vmatprep.subr.mxu0 0.0
        %1689 = vmatpush1.msra.mxu0 %v1041
        %1690 = vmatprep.subr.mxu0 0.0
        %1691 = vmatpush2.msra.mxu0 0.0
        %1692 = vmatprep.subr.mxu0 0.0
        %1693 = vmatpush2.msra.mxu0 0.0
        %1694 = vmatprep.subr.mxu0 0.0
        %1695 = vmatpush2.msra.mxu0 0.0
        %1696 = vmatprep.subr.mxu0 0.0
        %1697 = vmatpush2.msra.mxu0 0.0
        %1698 = vmatprep.subr.mxu0 0.0
        %1699 = vmatpush2.msra.mxu0 0.0
        %1700 = vmatprep.subr.mxu0 0.0
        %1701 = vmatpush2.msra.mxu0 0.0
        %1702 = vmatprep.subr.mxu0 0.0
        %1703 = vmatpush2.msra.mxu0 0.0
        %1704 = vmatprep.subr.mxu0 0.0
        %1705 = vmatpush2.msra.mxu0 0.0
        %1706 = vmatprep.subr.mxu0 0.0
        %1707 = vmatpush2.msra.mxu0 0.0
        %1708 = vmatprep.subr.mxu0 0.0
        %1709 = vmatpush2.msra.mxu0 0.0
        %1710 = vmatprep.subr.mxu0 0.0
        %1711 = vmatpush2.msra.mxu0 0.0
        %1712 = vmatprep.subr.mxu0 0.0
        %1713 = vmatpush2.msra.mxu0 0.0
        %1714 = vmatprep.subr.mxu0 0.0
        %1715 = vmatpush2.msra.mxu0 0.0
        %1716 = vmatprep.subr.mxu0 0.0
        %1717 = vmatpush2.msra.mxu0 0.0
        %1718 = vmatprep.subr.mxu0 0.0
        %1719 = vmatpush2.msra.mxu0 0.0
        %1720 = vmatprep.subr.mxu0 0.0
        %1721 = vmatpush2.msra.mxu0 0.0
        %1722 = vmatprep.mubr.f32.mxu0 0.0
        %1723 = vmatmul.mubr.f32.gmra.mxu0 %v1052
        %v1724 = vpop.f32.mrf.mxu0
        %v1725 = vadd.f32 %v1047, %v1724
        %v1726 = vpop.f32.mrf.mxu0
        %1727 = vmatprep.mubr.f32.mxu0 0.0
        %1728 = vmatmul.mubr.f32.gmra.mxu0 %v1055
        %v1729 = vpop.f32.mrf.mxu0
        %v1730 = vadd.f32 %v1048, %v1729
        %v1731 = vpop.f32.mrf.mxu0
        %1732 = vmatprep.mubr.f32.mxu0 0.0
        %1733 = vmatmul.mubr.f32.gmra.mxu0 %v1058
        %v1734 = vpop.f32.mrf.mxu0
        %v1735 = vadd.f32 %v1049, %v1734
        %v1736 = vpop.f32.mrf.mxu0
        %1737 = vmatprep.mubr.f32.mxu0 0.0
        %1738 = vmatmul.mubr.f32.gmra.mxu0 %v1061
        %v1739 = vpop.f32.mrf.mxu0
        %v1740 = vadd.f32 %v1050, %v1739
        %v1741 = vpop.f32.mrf.mxu0
        %1742 = vdwg.mxu0
        %v1743 = vmax.f32 %v1130, 0.0
        %v1744 = vmax.f32 %v1135, 0.0
        %v1745 = vmax.f32 %v1140, 0.0
        %v1746 = vmax.f32 %v1145, 0.0
        %v1747 = vmax.f32 %v1215, 0.0
        %v1748 = vmax.f32 %v1220, 0.0
        %v1749 = vmax.f32 %v1225, 0.0
        %v1750 = vmax.f32 %v1230, 0.0
        %v1751 = vmax.f32 %v1300, 0.0
        %v1752 = vmax.f32 %v1305, 0.0
        %v1753 = vmax.f32 %v1310, 0.0
        %v1754 = vmax.f32 %v1315, 0.0
        %v1755 = vmax.f32 %v1385, 0.0
        %v1756 = vmax.f32 %v1390, 0.0
        %v1757 = vmax.f32 %v1395, 0.0
        %v1758 = vmax.f32 %v1400, 0.0
        %v1759 = vmax.f32 %v1470, 0.0
        %v1760 = vmax.f32 %v1475, 0.0
        %v1761 = vmax.f32 %v1480, 0.0
        %v1762 = vmax.f32 %v1485, 0.0
        %v1763 = vmax.f32 %v1555, 0.0
        %v1764 = vmax.f32 %v1560, 0.0
        %v1765 = vmax.f32 %v1565, 0.0
        %v1766 = vmax.f32 %v1570, 0.0
        %v1767 = vmax.f32 %v1640, 0.0
        %v1768 = vmax.f32 %v1645, 0.0
        %v1769 = vmax.f32 %v1650, 0.0
        %v1770 = vmax.f32 %v1655, 0.0
        %v1771 = vmax.f32 %v1725, 0.0
        %v1772 = vmax.f32 %v1730, 0.0
        %v1773 = vmax.f32 %v1735, 0.0
        %v1774 = vmax.f32 %v1740, 0.0
        %v1775 = vmin.f32 %v1743, 1.0
        %v1776 = vmin.f32 %v1744, 1.0
        %v1777 = vmin.f32 %v1745, 1.0
        %v1778 = vmin.f32 %v1746, 1.0
        %v1779 = vmin.f32 %v1747, 1.0
        %v1780 = vmin.f32 %v1748, 1.0
        %v1781 = vmin.f32 %v1749, 1.0
        %v1782 = vmin.f32 %v1750, 1.0
        %v1783 = vmin.f32 %v1751, 1.0
        %v1784 = vmin.f32 %v1752, 1.0
        %v1785 = vmin.f32 %v1753, 1.0
        %v1786 = vmin.f32 %v1754, 1.0
        %v1787 = vmin.f32 %v1755, 1.0
        %v1788 = vmin.f32 %v1756, 1.0
        %v1789 = vmin.f32 %v1757, 1.0
        %v1790 = vmin.f32 %v1758, 1.0
        %v1791 = vmin.f32 %v1759, 1.0
        %v1792 = vmin.f32 %v1760, 1.0
        %v1793 = vmin.f32 %v1761, 1.0
        %v1794 = vmin.f32 %v1762, 1.0
        %v1795 = vmin.f32 %v1763, 1.0
        %v1796 = vmin.f32 %v1764, 1.0
        %v1797 = vmin.f32 %v1765, 1.0
        %v1798 = vmin.f32 %v1766, 1.0
        %v1799 = vmin.f32 %v1767, 1.0
        %v1800 = vmin.f32 %v1768, 1.0
        %v1801 = vmin.f32 %v1769, 1.0
        %v1802 = vmin.f32 %v1770, 1.0
        %v1803 = vmin.f32 %v1771, 1.0
        %v1804 = vmin.f32 %v1772, 1.0
        %v1805 = vmin.f32 %v1773, 1.0
        %v1806 = vmin.f32 %v1774, 1.0
        %v1807 = vpack.c.bf16 %v1776, %v1775
        %v1808 = vpack.c.bf16 %v1778, %v1777
        %v1809 = vpack.c.bf16 %v1780, %v1779
        %v1810 = vpack.c.bf16 %v1782, %v1781
        %v1811 = vpack.c.bf16 %v1784, %v1783
        %v1812 = vpack.c.bf16 %v1786, %v1785
        %v1813 = vpack.c.bf16 %v1788, %v1787
        %v1814 = vpack.c.bf16 %v1790, %v1789
        %v1815 = vpack.c.bf16 %v1792, %v1791
        %v1816 = vpack.c.bf16 %v1794, %v1793
        %v1817 = vpack.c.bf16 %v1796, %v1795
        %v1818 = vpack.c.bf16 %v1798, %v1797
        %v1819 = vpack.c.bf16 %v1800, %v1799
        %v1820 = vpack.c.bf16 %v1802, %v1801
        %v1821 = vpack.c.bf16 %v1804, %v1803
        %v1822 = vpack.c.bf16 %v1806, %v1805
        %v1823 = vld [vmem:[%s5] sm:$0xf]
        %v1824 = vld [vmem:[%s5 + $0x4] sm:$0xf]
        %v1825 = vld [vmem:[%s5 + $0x8] sm:$0xf]
        %v1826 = vld [vmem:[%s5 + $0xc] sm:$0xf]
        %v1827 = vld [vmem:[%s5 + $0x10] sm:$0xf]
        %v1828 = vld [vmem:[%s5 + $0x14] sm:$0xf]
        %v1829 = vld [vmem:[%s5 + $0x18] sm:$0xf]
        %v1830 = vld [vmem:[%s5 + $0x1c] sm:$0xf]
        %v1831 = vld [vmem:[%s5 + $0x20] sm:$0xf]
        %v1832 = vld [vmem:[%s5 + $0x24] sm:$0xf]
        %v1833 = vld [vmem:[%s5 + $0x28] sm:$0xf]
        %v1834 = vld [vmem:[%s5 + $0x2c] sm:$0xf]
        %v1847 = vunpack.c.l.b16 %v1823
        %v1848 = vunpack.c.l.b16 %v1824
        %v1849 = vunpack.c.l.b16 %v1825
        %v1850 = vunpack.c.l.b16 %v1826
        %v1851 = vunpack.c.l.b16 %v1827
        %v1852 = vunpack.c.l.b16 %v1828
        %v1853 = vunpack.c.l.b16 %v1829
        %v1854 = vunpack.c.l.b16 %v1830
        %v1855 = vunpack.c.l.b16 %v1831
        %v1856 = vunpack.c.l.b16 %v1832
        %v1857 = vunpack.c.l.b16 %v1833
        %v1858 = vunpack.c.l.b16 %v1834
        %v1859 = vpack.c.b16 %v1848, %v1847
        %v1860 = vpack.c.b16 %v1850, %v1849
        %v1861 = vpack.c.b16 %v1852, %v1851
        %v1862 = vpack.c.b16 %v1854, %v1853
        %v1863 = vpack.c.b16 %v1856, %v1855
        %v1864 = vpack.c.b16 %v1858, %v1857
        %vm1871 = vcmask 785408
        %v1873 = vsel %vm1871, %v1807, 0
        %v1876 = vsel %vm1871, %v1808, 0
        %v1879 = vsel %vm1871, %v1809, 0
        %v1882 = vsel %vm1871, %v1810, 0
        %v1885 = vsel %vm1871, %v1811, 0
        %v1888 = vsel %vm1871, %v1812, 0
        %v1891 = vsel %vm1871, %v1813, 0
        %v1894 = vsel %vm1871, %v1814, 0
        %v1897 = vsel %vm1871, %v1815, 0
        %v1900 = vsel %vm1871, %v1816, 0
        %v1903 = vsel %vm1871, %v1817, 0
        %v1906 = vsel %vm1871, %v1818, 0
        %v1909 = vsel %vm1871, %v1819, 0
        %v1912 = vsel %vm1871, %v1820, 0
        %v1915 = vsel %vm1871, %v1821, 0
        %v1918 = vsel %vm1871, %v1822, 0
        %1920 = vmatprep.subr.bf16.mxu0 0
        %1921 = vmatpush1.bf16.msra.mxu0 0
        %1922 = vmatprep.subr.bf16.mxu0 0
        %1923 = vmatpush1.bf16.msra.mxu0 0
        %1924 = vmatprep.subr.bf16.mxu0 0
        %1925 = vmatpush1.bf16.msra.mxu0 %v1864
        %1926 = vmatprep.subr.bf16.mxu0 0
        %1927 = vmatpush1.bf16.msra.mxu0 %v1863
        %1928 = vmatprep.subr.bf16.mxu0 0
        %1929 = vmatpush1.bf16.msra.mxu0 %v1862
        %1930 = vmatprep.subr.bf16.mxu0 0
        %1931 = vmatpush1.bf16.msra.mxu0 %v1861
        %1932 = vmatprep.subr.bf16.mxu0 0
        %1933 = vmatpush1.bf16.msra.mxu0 %v1860
        %1934 = vmatprep.subr.bf16.mxu0 0
        %1935 = vmatpush1.bf16.msra.mxu0 %v1859
        %1936 = vmatprep.subr.bf16.mxu0 0
        %1937 = vmatpush2.bf16.msra.mxu0 0
        %1938 = vmatprep.subr.bf16.mxu0 0
        %1939 = vmatpush2.bf16.msra.mxu0 0
        %1940 = vmatprep.subr.bf16.mxu0 0
        %1941 = vmatpush2.bf16.msra.mxu0 0
        %1942 = vmatprep.subr.bf16.mxu0 0
        %1943 = vmatpush2.bf16.msra.mxu0 0
        %1944 = vmatprep.subr.bf16.mxu0 0
        %1945 = vmatpush2.bf16.msra.mxu0 0
        %1946 = vmatprep.subr.bf16.mxu0 0
        %1947 = vmatpush2.bf16.msra.mxu0 0
        %1948 = vmatprep.subr.bf16.mxu0 0
        %1949 = vmatpush2.bf16.msra.mxu0 0
        %1950 = vmatprep.subr.bf16.mxu0 0
        %1951 = vmatpush2.bf16.msra.mxu0 0
        %1952 = vmatprep.mubr.bf16.mxu0 0
        %1953 = vmatmul.mubr.bf16.gmra.mxu0 %v1873
        %v1954 = vpop.f32.mrf.mxu0
        %v1955 = vadd.f32 0.0, %v1954
        %v1956 = vpop.f32.mrf.mxu0
        %v1957 = vpop.f32.mrf.mxu0
        %v1958 = vadd.f32 0.0, %v1957
        %v1959 = vpop.f32.mrf.mxu0
        %1960 = vmatprep.mubr.bf16.mxu0 0
        %1961 = vmatmul.mubr.bf16.gmra.mxu0 %v1876
        %v1962 = vpop.f32.mrf.mxu0
        %v1963 = vadd.f32 0.0, %v1962
        %v1964 = vpop.f32.mrf.mxu0
        %v1965 = vpop.f32.mrf.mxu0
        %v1966 = vadd.f32 0.0, %v1965
        %v1967 = vpop.f32.mrf.mxu0
        %1968 = vmatprep.mubr.bf16.mxu0 0
        %1969 = vmatmul.mubr.bf16.gmra.mxu0 %v1879
        %v1970 = vpop.f32.mrf.mxu0
        %v1971 = vadd.f32 0.0, %v1970
        %v1972 = vpop.f32.mrf.mxu0
        %v1973 = vpop.f32.mrf.mxu0
        %v1974 = vadd.f32 0.0, %v1973
        %v1975 = vpop.f32.mrf.mxu0
        %1976 = vmatprep.mubr.bf16.mxu0 0
        %1977 = vmatmul.mubr.bf16.gmra.mxu0 %v1882
        %v1978 = vpop.f32.mrf.mxu0
        %v1979 = vadd.f32 0.0, %v1978
        %v1980 = vpop.f32.mrf.mxu0
        %v1981 = vpop.f32.mrf.mxu0
        %v1982 = vadd.f32 0.0, %v1981
        %v1983 = vpop.f32.mrf.mxu0
        %1984 = vmatprep.mubr.bf16.mxu0 0
        %1985 = vmatmul.mubr.bf16.gmra.mxu0 %v1885
        %v1986 = vpop.f32.mrf.mxu0
        %v1987 = vadd.f32 0.0, %v1986
        %v1988 = vpop.f32.mrf.mxu0
        %v1989 = vpop.f32.mrf.mxu0
        %v1990 = vadd.f32 0.0, %v1989
        %v1991 = vpop.f32.mrf.mxu0
        %1992 = vmatprep.mubr.bf16.mxu0 0
        %1993 = vmatmul.mubr.bf16.gmra.mxu0 %v1888
        %v1994 = vpop.f32.mrf.mxu0
        %v1995 = vadd.f32 0.0, %v1994
        %v1996 = vpop.f32.mrf.mxu0
        %v1997 = vpop.f32.mrf.mxu0
        %v1998 = vadd.f32 0.0, %v1997
        %v1999 = vpop.f32.mrf.mxu0
        %2000 = vmatprep.mubr.bf16.mxu0 0
        %2001 = vmatmul.mubr.bf16.gmra.mxu0 %v1891
        %v2002 = vpop.f32.mrf.mxu0
        %v2003 = vadd.f32 0.0, %v2002
        %v2004 = vpop.f32.mrf.mxu0
        %v2005 = vpop.f32.mrf.mxu0
        %v2006 = vadd.f32 0.0, %v2005
        %v2007 = vpop.f32.mrf.mxu0
        %2008 = vmatprep.mubr.bf16.mxu0 0
        %2009 = vmatmul.mubr.bf16.gmra.mxu0 %v1894
        %v2010 = vpop.f32.mrf.mxu0
        %v2011 = vadd.f32 0.0, %v2010
        %v2012 = vpop.f32.mrf.mxu0
        %v2013 = vpop.f32.mrf.mxu0
        %v2014 = vadd.f32 0.0, %v2013
        %v2015 = vpop.f32.mrf.mxu0
        %2016 = vmatprep.mubr.bf16.mxu0 0
        %2017 = vmatmul.mubr.bf16.gmra.mxu0 %v1897
        %v2018 = vpop.f32.mrf.mxu0
        %v2019 = vadd.f32 0.0, %v2018
        %v2020 = vpop.f32.mrf.mxu0
        %v2021 = vpop.f32.mrf.mxu0
        %v2022 = vadd.f32 0.0, %v2021
        %v2023 = vpop.f32.mrf.mxu0
        %2024 = vmatprep.mubr.bf16.mxu0 0
        %2025 = vmatmul.mubr.bf16.gmra.mxu0 %v1900
        %v2026 = vpop.f32.mrf.mxu0
        %v2027 = vadd.f32 0.0, %v2026
        %v2028 = vpop.f32.mrf.mxu0
        %v2029 = vpop.f32.mrf.mxu0
        %v2030 = vadd.f32 0.0, %v2029
        %v2031 = vpop.f32.mrf.mxu0
        %2032 = vmatprep.mubr.bf16.mxu0 0
        %2033 = vmatmul.mubr.bf16.gmra.mxu0 %v1903
        %v2034 = vpop.f32.mrf.mxu0
        %v2035 = vadd.f32 0.0, %v2034
        %v2036 = vpop.f32.mrf.mxu0
        %v2037 = vpop.f32.mrf.mxu0
        %v2038 = vadd.f32 0.0, %v2037
        %v2039 = vpop.f32.mrf.mxu0
        %2040 = vmatprep.mubr.bf16.mxu0 0
        %2041 = vmatmul.mubr.bf16.gmra.mxu0 %v1906
        %v2042 = vpop.f32.mrf.mxu0
        %v2043 = vadd.f32 0.0, %v2042
        %v2044 = vpop.f32.mrf.mxu0
        %v2045 = vpop.f32.mrf.mxu0
        %v2046 = vadd.f32 0.0, %v2045
        %v2047 = vpop.f32.mrf.mxu0
        %2048 = vmatprep.mubr.bf16.mxu0 0
        %2049 = vmatmul.mubr.bf16.gmra.mxu0 %v1909
        %v2050 = vpop.f32.mrf.mxu0
        %v2051 = vadd.f32 0.0, %v2050
        %v2052 = vpop.f32.mrf.mxu0
        %v2053 = vpop.f32.mrf.mxu0
        %v2054 = vadd.f32 0.0, %v2053
        %v2055 = vpop.f32.mrf.mxu0
        %2056 = vmatprep.mubr.bf16.mxu0 0
        %2057 = vmatmul.mubr.bf16.gmra.mxu0 %v1912
        %v2058 = vpop.f32.mrf.mxu0
        %v2059 = vadd.f32 0.0, %v2058
        %v2060 = vpop.f32.mrf.mxu0
        %v2061 = vpop.f32.mrf.mxu0
        %v2062 = vadd.f32 0.0, %v2061
        %v2063 = vpop.f32.mrf.mxu0
        %2064 = vmatprep.mubr.bf16.mxu0 0
        %2065 = vmatmul.mubr.bf16.gmra.mxu0 %v1915
        %v2066 = vpop.f32.mrf.mxu0
        %v2067 = vadd.f32 0.0, %v2066
        %v2068 = vpop.f32.mrf.mxu0
        %v2069 = vpop.f32.mrf.mxu0
        %v2070 = vadd.f32 0.0, %v2069
        %v2071 = vpop.f32.mrf.mxu0
        %2072 = vmatprep.mubr.bf16.mxu0 0
        %2073 = vmatmul.mubr.bf16.gmra.mxu0 %v1918
        %v2074 = vpop.f32.mrf.mxu0
        %v2075 = vadd.f32 0.0, %v2074
        %v2076 = vpop.f32.mrf.mxu0
        %v2077 = vpop.f32.mrf.mxu0
        %v2078 = vadd.f32 0.0, %v2077
        %v2079 = vpop.f32.mrf.mxu0
        %2080 = vdwg.mxu0
        %v2081 = vld [vmem:[%s6] sm:$0xff]
        %v2082 = vld [vmem:[%s6 + $0x8] sm:$0xff]
        %v2083 = vld [vmem:[%s6 + $0x10] sm:$0xff]
        %v2084 = vld [vmem:[%s6 + $0x18] sm:$0xff]
        %v2085 = vadd.f32 %v1955, %v2081
        %v2086 = vadd.f32 %v1958, %v2082
        %v2087 = vadd.f32 %v1963, %v2083
        %v2088 = vadd.f32 %v1966, %v2084
        %v2089 = vadd.f32 %v1971, %v2081
        %v2090 = vadd.f32 %v1974, %v2082
        %v2091 = vadd.f32 %v1979, %v2083
        %v2092 = vadd.f32 %v1982, %v2084
        %v2093 = vadd.f32 %v1987, %v2081
        %v2094 = vadd.f32 %v1990, %v2082
        %v2095 = vadd.f32 %v1995, %v2083
        %v2096 = vadd.f32 %v1998, %v2084
        %v2097 = vadd.f32 %v2003, %v2081
        %v2098 = vadd.f32 %v2006, %v2082
        %v2099 = vadd.f32 %v2011, %v2083
        %v2100 = vadd.f32 %v2014, %v2084
        %v2101 = vadd.f32 %v2019, %v2081
        %v2102 = vadd.f32 %v2022, %v2082
        %v2103 = vadd.f32 %v2027, %v2083
        %v2104 = vadd.f32 %v2030, %v2084
        %v2105 = vadd.f32 %v2035, %v2081
        %v2106 = vadd.f32 %v2038, %v2082
        %v2107 = vadd.f32 %v2043, %v2083
        %v2108 = vadd.f32 %v2046, %v2084
        %v2109 = vadd.f32 %v2051, %v2081
        %v2110 = vadd.f32 %v2054, %v2082
        %v2111 = vadd.f32 %v2059, %v2083
        %v2112 = vadd.f32 %v2062, %v2084
        %v2113 = vadd.f32 %v2067, %v2081
        %v2114 = vadd.f32 %v2070, %v2082
        %v2115 = vadd.f32 %v2075, %v2083
        %v2116 = vadd.f32 %v2078, %v2084
        %2117 = vadd.xlane.f32.xlu0 %v2085
        %v2118 = vpop.xlane.xlu0 %2117
        %2119 = vadd.xlane.f32.xlu0 %v2086
        %v2120 = vpop.xlane.xlu0 %2119
        %2121 = vadd.xlane.f32.xlu0 %v2087
        %v2122 = vpop.xlane.xlu0 %2121
        %2123 = vadd.xlane.f32.xlu0 %v2088
        %v2124 = vpop.xlane.xlu0 %2123
        %2125 = vadd.xlane.f32.xlu0 %v2089
        %v2126 = vpop.xlane.xlu0 %2125
        %2127 = vadd.xlane.f32.xlu0 %v2090
        %v2128 = vpop.xlane.xlu0 %2127
        %2129 = vadd.xlane.f32.xlu0 %v2091
        %v2130 = vpop.xlane.xlu0 %2129
        %2131 = vadd.xlane.f32.xlu0 %v2092
        %v2132 = vpop.xlane.xlu0 %2131
        %2133 = vadd.xlane.f32.xlu0 %v2093
        %v2134 = vpop.xlane.xlu0 %2133
        %2135 = vadd.xlane.f32.xlu0 %v2094
        %v2136 = vpop.xlane.xlu0 %2135
        %2137 = vadd.xlane.f32.xlu0 %v2095
        %v2138 = vpop.xlane.xlu0 %2137
        %2139 = vadd.xlane.f32.xlu0 %v2096
        %v2140 = vpop.xlane.xlu0 %2139
        %2141 = vadd.xlane.f32.xlu0 %v2097
        %v2142 = vpop.xlane.xlu0 %2141
        %2143 = vadd.xlane.f32.xlu0 %v2098
        %v2144 = vpop.xlane.xlu0 %2143
        %2145 = vadd.xlane.f32.xlu0 %v2099
        %v2146 = vpop.xlane.xlu0 %2145
        %2147 = vadd.xlane.f32.xlu0 %v2100
        %v2148 = vpop.xlane.xlu0 %2147
        %2149 = vadd.xlane.f32.xlu0 %v2101
        %v2150 = vpop.xlane.xlu0 %2149
        %2151 = vadd.xlane.f32.xlu0 %v2102
        %v2152 = vpop.xlane.xlu0 %2151
        %2153 = vadd.xlane.f32.xlu0 %v2103
        %v2154 = vpop.xlane.xlu0 %2153
        %2155 = vadd.xlane.f32.xlu0 %v2104
        %v2156 = vpop.xlane.xlu0 %2155
        %2157 = vadd.xlane.f32.xlu0 %v2105
        %v2158 = vpop.xlane.xlu0 %2157
        %2159 = vadd.xlane.f32.xlu0 %v2106
        %v2160 = vpop.xlane.xlu0 %2159
        %2161 = vadd.xlane.f32.xlu0 %v2107
        %v2162 = vpop.xlane.xlu0 %2161
        %2163 = vadd.xlane.f32.xlu0 %v2108
        %v2164 = vpop.xlane.xlu0 %2163
        %2165 = vadd.xlane.f32.xlu0 %v2109
        %v2166 = vpop.xlane.xlu0 %2165
        %2167 = vadd.xlane.f32.xlu0 %v2110
        %v2168 = vpop.xlane.xlu0 %2167
        %2169 = vadd.xlane.f32.xlu0 %v2111
        %v2170 = vpop.xlane.xlu0 %2169
        %2171 = vadd.xlane.f32.xlu0 %v2112
        %v2172 = vpop.xlane.xlu0 %2171
        %2173 = vadd.xlane.f32.xlu0 %v2113
        %v2174 = vpop.xlane.xlu0 %2173
        %2175 = vadd.xlane.f32.xlu0 %v2114
        %v2176 = vpop.xlane.xlu0 %2175
        %2177 = vadd.xlane.f32.xlu0 %v2115
        %v2178 = vpop.xlane.xlu0 %2177
        %2179 = vadd.xlane.f32.xlu0 %v2116
        %v2180 = vpop.xlane.xlu0 %2179
        %v2181 = vrcp.pop 128.0
        %v2182 = vmul.f32 %v2118, %v2181
        %v2183 = vmul.f32 %v2120, %v2181
        %v2184 = vmul.f32 %v2122, %v2181
        %v2185 = vmul.f32 %v2124, %v2181
        %v2186 = vmul.f32 %v2126, %v2181
        %v2187 = vmul.f32 %v2128, %v2181
        %v2188 = vmul.f32 %v2130, %v2181
        %v2189 = vmul.f32 %v2132, %v2181
        %v2190 = vmul.f32 %v2134, %v2181
        %v2191 = vmul.f32 %v2136, %v2181
        %v2192 = vmul.f32 %v2138, %v2181
        %v2193 = vmul.f32 %v2140, %v2181
        %v2194 = vmul.f32 %v2142, %v2181
        %v2195 = vmul.f32 %v2144, %v2181
        %v2196 = vmul.f32 %v2146, %v2181
        %v2197 = vmul.f32 %v2148, %v2181
        %v2198 = vmul.f32 %v2150, %v2181
        %v2199 = vmul.f32 %v2152, %v2181
        %v2200 = vmul.f32 %v2154, %v2181
        %v2201 = vmul.f32 %v2156, %v2181
        %v2202 = vmul.f32 %v2158, %v2181
        %v2203 = vmul.f32 %v2160, %v2181
        %v2204 = vmul.f32 %v2162, %v2181
        %v2205 = vmul.f32 %v2164, %v2181
        %v2206 = vmul.f32 %v2166, %v2181
        %v2207 = vmul.f32 %v2168, %v2181
        %v2208 = vmul.f32 %v2170, %v2181
        %v2209 = vmul.f32 %v2172, %v2181
        %v2210 = vmul.f32 %v2174, %v2181
        %v2211 = vmul.f32 %v2176, %v2181
        %v2212 = vmul.f32 %v2178, %v2181
        %v2213 = vmul.f32 %v2180, %v2181
        %v2214 = vsub.f32 %v2085, %v2182
        %v2215 = vsub.f32 %v2086, %v2183
        %v2216 = vsub.f32 %v2087, %v2184
        %v2217 = vsub.f32 %v2088, %v2185
        %v2218 = vsub.f32 %v2089, %v2186
        %v2219 = vsub.f32 %v2090, %v2187
        %v2220 = vsub.f32 %v2091, %v2188
        %v2221 = vsub.f32 %v2092, %v2189
        %v2222 = vsub.f32 %v2093, %v2190
        %v2223 = vsub.f32 %v2094, %v2191
        %v2224 = vsub.f32 %v2095, %v2192
        %v2225 = vsub.f32 %v2096, %v2193
        %v2226 = vsub.f32 %v2097, %v2194
        %v2227 = vsub.f32 %v2098, %v2195
        %v2228 = vsub.f32 %v2099, %v2196
        %v2229 = vsub.f32 %v2100, %v2197
        %v2230 = vsub.f32 %v2101, %v2198
        %v2231 = vsub.f32 %v2102, %v2199
        %v2232 = vsub.f32 %v2103, %v2200
        %v2233 = vsub.f32 %v2104, %v2201
        %v2234 = vsub.f32 %v2105, %v2202
        %v2235 = vsub.f32 %v2106, %v2203
        %v2236 = vsub.f32 %v2107, %v2204
        %v2237 = vsub.f32 %v2108, %v2205
        %v2238 = vsub.f32 %v2109, %v2206
        %v2239 = vsub.f32 %v2110, %v2207
        %v2240 = vsub.f32 %v2111, %v2208
        %v2241 = vsub.f32 %v2112, %v2209
        %v2242 = vsub.f32 %v2113, %v2210
        %v2243 = vsub.f32 %v2114, %v2211
        %v2244 = vsub.f32 %v2115, %v2212
        %v2245 = vsub.f32 %v2116, %v2213
        %v2246 = vmul.f32 %v2214, %v2214
        %v2247 = vmul.f32 %v2215, %v2215
        %v2248 = vmul.f32 %v2216, %v2216
        %v2249 = vmul.f32 %v2217, %v2217
        %v2250 = vmul.f32 %v2218, %v2218
        %v2251 = vmul.f32 %v2219, %v2219
        %v2252 = vmul.f32 %v2220, %v2220
        %v2253 = vmul.f32 %v2221, %v2221
        %v2254 = vmul.f32 %v2222, %v2222
        %v2255 = vmul.f32 %v2223, %v2223
        %v2256 = vmul.f32 %v2224, %v2224
        %v2257 = vmul.f32 %v2225, %v2225
        %v2258 = vmul.f32 %v2226, %v2226
        %v2259 = vmul.f32 %v2227, %v2227
        %v2260 = vmul.f32 %v2228, %v2228
        %v2261 = vmul.f32 %v2229, %v2229
        %v2262 = vmul.f32 %v2230, %v2230
        %v2263 = vmul.f32 %v2231, %v2231
        %v2264 = vmul.f32 %v2232, %v2232
        %v2265 = vmul.f32 %v2233, %v2233
        %v2266 = vmul.f32 %v2234, %v2234
        %v2267 = vmul.f32 %v2235, %v2235
        %v2268 = vmul.f32 %v2236, %v2236
        %v2269 = vmul.f32 %v2237, %v2237
        %v2270 = vmul.f32 %v2238, %v2238
        %v2271 = vmul.f32 %v2239, %v2239
        %v2272 = vmul.f32 %v2240, %v2240
        %v2273 = vmul.f32 %v2241, %v2241
        %v2274 = vmul.f32 %v2242, %v2242
        %v2275 = vmul.f32 %v2243, %v2243
        %v2276 = vmul.f32 %v2244, %v2244
        %v2277 = vmul.f32 %v2245, %v2245
        %2278 = vadd.xlane.f32.xlu0 %v2246
        %v2279 = vpop.xlane.xlu0 %2278
        %2280 = vadd.xlane.f32.xlu0 %v2247
        %v2281 = vpop.xlane.xlu0 %2280
        %2282 = vadd.xlane.f32.xlu0 %v2248
        %v2283 = vpop.xlane.xlu0 %2282
        %2284 = vadd.xlane.f32.xlu0 %v2249
        %v2285 = vpop.xlane.xlu0 %2284
        %2286 = vadd.xlane.f32.xlu0 %v2250
        %v2287 = vpop.xlane.xlu0 %2286
        %2288 = vadd.xlane.f32.xlu0 %v2251
        %v2289 = vpop.xlane.xlu0 %2288
        %2290 = vadd.xlane.f32.xlu0 %v2252
        %v2291 = vpop.xlane.xlu0 %2290
        %2292 = vadd.xlane.f32.xlu0 %v2253
        %v2293 = vpop.xlane.xlu0 %2292
        %2294 = vadd.xlane.f32.xlu0 %v2254
        %v2295 = vpop.xlane.xlu0 %2294
        %2296 = vadd.xlane.f32.xlu0 %v2255
        %v2297 = vpop.xlane.xlu0 %2296
        %2298 = vadd.xlane.f32.xlu0 %v2256
        %v2299 = vpop.xlane.xlu0 %2298
        %2300 = vadd.xlane.f32.xlu0 %v2257
        %v2301 = vpop.xlane.xlu0 %2300
        %2302 = vadd.xlane.f32.xlu0 %v2258
        %v2303 = vpop.xlane.xlu0 %2302
        %2304 = vadd.xlane.f32.xlu0 %v2259
        %v2305 = vpop.xlane.xlu0 %2304
        %2306 = vadd.xlane.f32.xlu0 %v2260
        %v2307 = vpop.xlane.xlu0 %2306
        %2308 = vadd.xlane.f32.xlu0 %v2261
        %v2309 = vpop.xlane.xlu0 %2308
        %2310 = vadd.xlane.f32.xlu0 %v2262
        %v2311 = vpop.xlane.xlu0 %2310
        %2312 = vadd.xlane.f32.xlu0 %v2263
        %v2313 = vpop.xlane.xlu0 %2312
        %2314 = vadd.xlane.f32.xlu0 %v2264
        %v2315 = vpop.xlane.xlu0 %2314
        %2316 = vadd.xlane.f32.xlu0 %v2265
        %v2317 = vpop.xlane.xlu0 %2316
        %2318 = vadd.xlane.f32.xlu0 %v2266
        %v2319 = vpop.xlane.xlu0 %2318
        %2320 = vadd.xlane.f32.xlu0 %v2267
        %v2321 = vpop.xlane.xlu0 %2320
        %2322 = vadd.xlane.f32.xlu0 %v2268
        %v2323 = vpop.xlane.xlu0 %2322
        %2324 = vadd.xlane.f32.xlu0 %v2269
        %v2325 = vpop.xlane.xlu0 %2324
        %2326 = vadd.xlane.f32.xlu0 %v2270
        %v2327 = vpop.xlane.xlu0 %2326
        %2328 = vadd.xlane.f32.xlu0 %v2271
        %v2329 = vpop.xlane.xlu0 %2328
        %2330 = vadd.xlane.f32.xlu0 %v2272
        %v2331 = vpop.xlane.xlu0 %2330
        %2332 = vadd.xlane.f32.xlu0 %v2273
        %v2333 = vpop.xlane.xlu0 %2332
        %2334 = vadd.xlane.f32.xlu0 %v2274
        %v2335 = vpop.xlane.xlu0 %2334
        %2336 = vadd.xlane.f32.xlu0 %v2275
        %v2337 = vpop.xlane.xlu0 %2336
        %2338 = vadd.xlane.f32.xlu0 %v2276
        %v2339 = vpop.xlane.xlu0 %2338
        %2340 = vadd.xlane.f32.xlu0 %v2277
        %v2341 = vpop.xlane.xlu0 %2340
        %v2342 = vmul.f32 %v2279, %v2181
        %v2343 = vmul.f32 %v2281, %v2181
        %v2344 = vmul.f32 %v2283, %v2181
        %v2345 = vmul.f32 %v2285, %v2181
        %v2346 = vmul.f32 %v2287, %v2181
        %v2347 = vmul.f32 %v2289, %v2181
        %v2348 = vmul.f32 %v2291, %v2181
        %v2349 = vmul.f32 %v2293, %v2181
        %v2350 = vmul.f32 %v2295, %v2181
        %v2351 = vmul.f32 %v2297, %v2181
        %v2352 = vmul.f32 %v2299, %v2181
        %v2353 = vmul.f32 %v2301, %v2181
        %v2354 = vmul.f32 %v2303, %v2181
        %v2355 = vmul.f32 %v2305, %v2181
        %v2356 = vmul.f32 %v2307, %v2181
        %v2357 = vmul.f32 %v2309, %v2181
        %v2358 = vmul.f32 %v2311, %v2181
        %v2359 = vmul.f32 %v2313, %v2181
        %v2360 = vmul.f32 %v2315, %v2181
        %v2361 = vmul.f32 %v2317, %v2181
        %v2362 = vmul.f32 %v2319, %v2181
        %v2363 = vmul.f32 %v2321, %v2181
        %v2364 = vmul.f32 %v2323, %v2181
        %v2365 = vmul.f32 %v2325, %v2181
        %v2366 = vmul.f32 %v2327, %v2181
        %v2367 = vmul.f32 %v2329, %v2181
        %v2368 = vmul.f32 %v2331, %v2181
        %v2369 = vmul.f32 %v2333, %v2181
        %v2370 = vmul.f32 %v2335, %v2181
        %v2371 = vmul.f32 %v2337, %v2181
        %v2372 = vmul.f32 %v2339, %v2181
        %v2373 = vmul.f32 %v2341, %v2181
        %v2374 = vadd.f32 %v2342, 1e-05
        %v2375 = vadd.f32 %v2343, 1e-05
        %v2376 = vadd.f32 %v2344, 1e-05
        %v2377 = vadd.f32 %v2345, 1e-05
        %v2378 = vadd.f32 %v2346, 1e-05
        %v2379 = vadd.f32 %v2347, 1e-05
        %v2380 = vadd.f32 %v2348, 1e-05
        %v2381 = vadd.f32 %v2349, 1e-05
        %v2382 = vadd.f32 %v2350, 1e-05
        %v2383 = vadd.f32 %v2351, 1e-05
        %v2384 = vadd.f32 %v2352, 1e-05
        %v2385 = vadd.f32 %v2353, 1e-05
        %v2386 = vadd.f32 %v2354, 1e-05
        %v2387 = vadd.f32 %v2355, 1e-05
        %v2388 = vadd.f32 %v2356, 1e-05
        %v2389 = vadd.f32 %v2357, 1e-05
        %v2390 = vadd.f32 %v2358, 1e-05
        %v2391 = vadd.f32 %v2359, 1e-05
        %v2392 = vadd.f32 %v2360, 1e-05
        %v2393 = vadd.f32 %v2361, 1e-05
        %v2394 = vadd.f32 %v2362, 1e-05
        %v2395 = vadd.f32 %v2363, 1e-05
        %v2396 = vadd.f32 %v2364, 1e-05
        %v2397 = vadd.f32 %v2365, 1e-05
        %v2398 = vadd.f32 %v2366, 1e-05
        %v2399 = vadd.f32 %v2367, 1e-05
        %v2400 = vadd.f32 %v2368, 1e-05
        %v2401 = vadd.f32 %v2369, 1e-05
        %v2402 = vadd.f32 %v2370, 1e-05
        %v2403 = vadd.f32 %v2371, 1e-05
        %v2404 = vadd.f32 %v2372, 1e-05
        %v2405 = vadd.f32 %v2373, 1e-05
        %v2406 = vrsqrt.pop %v2374
        %v2407 = vrsqrt.pop %v2375
        %v2408 = vrsqrt.pop %v2376
        %v2409 = vrsqrt.pop %v2377
        %v2410 = vrsqrt.pop %v2378
        %v2411 = vrsqrt.pop %v2379
        %v2412 = vrsqrt.pop %v2380
        %v2413 = vrsqrt.pop %v2381
        %v2414 = vrsqrt.pop %v2382
        %v2415 = vrsqrt.pop %v2383
        %v2416 = vrsqrt.pop %v2384
        %v2417 = vrsqrt.pop %v2385
        %v2418 = vrsqrt.pop %v2386
        %v2419 = vrsqrt.pop %v2387
        %v2420 = vrsqrt.pop %v2388
        %v2421 = vrsqrt.pop %v2389
        %v2422 = vrsqrt.pop %v2390
        %v2423 = vrsqrt.pop %v2391
        %v2424 = vrsqrt.pop %v2392
        %v2425 = vrsqrt.pop %v2393
        %v2426 = vrsqrt.pop %v2394
        %v2427 = vrsqrt.pop %v2395
        %v2428 = vrsqrt.pop %v2396
        %v2429 = vrsqrt.pop %v2397
        %v2430 = vrsqrt.pop %v2398
        %v2431 = vrsqrt.pop %v2399
        %v2432 = vrsqrt.pop %v2400
        %v2433 = vrsqrt.pop %v2401
        %v2434 = vrsqrt.pop %v2402
        %v2435 = vrsqrt.pop %v2403
        %v2436 = vrsqrt.pop %v2404
        %v2437 = vrsqrt.pop %v2405
        %v2438 = vmul.f32 %v2214, %v2406
        %v2439 = vmul.f32 %v2215, %v2407
        %v2440 = vmul.f32 %v2216, %v2408
        %v2441 = vmul.f32 %v2217, %v2409
        %v2442 = vmul.f32 %v2218, %v2410
        %v2443 = vmul.f32 %v2219, %v2411
        %v2444 = vmul.f32 %v2220, %v2412
        %v2445 = vmul.f32 %v2221, %v2413
        %v2446 = vmul.f32 %v2222, %v2414
        %v2447 = vmul.f32 %v2223, %v2415
        %v2448 = vmul.f32 %v2224, %v2416
        %v2449 = vmul.f32 %v2225, %v2417
        %v2450 = vmul.f32 %v2226, %v2418
        %v2451 = vmul.f32 %v2227, %v2419
        %v2452 = vmul.f32 %v2228, %v2420
        %v2453 = vmul.f32 %v2229, %v2421
        %v2454 = vmul.f32 %v2230, %v2422
        %v2455 = vmul.f32 %v2231, %v2423
        %v2456 = vmul.f32 %v2232, %v2424
        %v2457 = vmul.f32 %v2233, %v2425
        %v2458 = vmul.f32 %v2234, %v2426
        %v2459 = vmul.f32 %v2235, %v2427
        %v2460 = vmul.f32 %v2236, %v2428
        %v2461 = vmul.f32 %v2237, %v2429
        %v2462 = vmul.f32 %v2238, %v2430
        %v2463 = vmul.f32 %v2239, %v2431
        %v2464 = vmul.f32 %v2240, %v2432
        %v2465 = vmul.f32 %v2241, %v2433
        %v2466 = vmul.f32 %v2242, %v2434
        %v2467 = vmul.f32 %v2243, %v2435
        %v2468 = vmul.f32 %v2244, %v2436
        %v2469 = vmul.f32 %v2245, %v2437
        %v2470 = vld [vmem:[%s7] sm:$0x1]
        %v2472 = vlaneseq
        %v2473 = vshrl.u32 %v2472, 7
        %v2474 = vsub.s32 0, %v2473
        %v2475 = vrot.slane %v2470, %v2474
        %v2477 = vmul.f32 %v2438, %v2475
        %v2478 = vmul.f32 %v2439, %v2475
        %v2479 = vmul.f32 %v2440, %v2475
        %v2480 = vmul.f32 %v2441, %v2475
        %v2481 = vmul.f32 %v2442, %v2475
        %v2482 = vmul.f32 %v2443, %v2475
        %v2483 = vmul.f32 %v2444, %v2475
        %v2484 = vmul.f32 %v2445, %v2475
        %v2485 = vmul.f32 %v2446, %v2475
        %v2486 = vmul.f32 %v2447, %v2475
        %v2487 = vmul.f32 %v2448, %v2475
        %v2488 = vmul.f32 %v2449, %v2475
        %v2489 = vmul.f32 %v2450, %v2475
        %v2490 = vmul.f32 %v2451, %v2475
        %v2491 = vmul.f32 %v2452, %v2475
        %v2492 = vmul.f32 %v2453, %v2475
        %v2493 = vmul.f32 %v2454, %v2475
        %v2494 = vmul.f32 %v2455, %v2475
        %v2495 = vmul.f32 %v2456, %v2475
        %v2496 = vmul.f32 %v2457, %v2475
        %v2497 = vmul.f32 %v2458, %v2475
        %v2498 = vmul.f32 %v2459, %v2475
        %v2499 = vmul.f32 %v2460, %v2475
        %v2500 = vmul.f32 %v2461, %v2475
        %v2501 = vmul.f32 %v2462, %v2475
        %v2502 = vmul.f32 %v2463, %v2475
        %v2503 = vmul.f32 %v2464, %v2475
        %v2504 = vmul.f32 %v2465, %v2475
        %v2505 = vmul.f32 %v2466, %v2475
        %v2506 = vmul.f32 %v2467, %v2475
        %v2507 = vmul.f32 %v2468, %v2475
        %v2508 = vmul.f32 %v2469, %v2475
        %v2509 = vld [vmem:[%s8] sm:$0x1]
        %v2511 = vlaneseq
        %v2512 = vshrl.u32 %v2511, 7
        %v2513 = vsub.s32 0, %v2512
        %v2514 = vrot.slane %v2509, %v2513
        %v2516 = vadd.f32 %v2477, %v2514
        %v2517 = vadd.f32 %v2478, %v2514
        %v2518 = vadd.f32 %v2479, %v2514
        %v2519 = vadd.f32 %v2480, %v2514
        %v2520 = vadd.f32 %v2481, %v2514
        %v2521 = vadd.f32 %v2482, %v2514
        %v2522 = vadd.f32 %v2483, %v2514
        %v2523 = vadd.f32 %v2484, %v2514
        %v2524 = vadd.f32 %v2485, %v2514
        %v2525 = vadd.f32 %v2486, %v2514
        %v2526 = vadd.f32 %v2487, %v2514
        %v2527 = vadd.f32 %v2488, %v2514
        %v2528 = vadd.f32 %v2489, %v2514
        %v2529 = vadd.f32 %v2490, %v2514
        %v2530 = vadd.f32 %v2491, %v2514
        %v2531 = vadd.f32 %v2492, %v2514
        %v2532 = vadd.f32 %v2493, %v2514
        %v2533 = vadd.f32 %v2494, %v2514
        %v2534 = vadd.f32 %v2495, %v2514
        %v2535 = vadd.f32 %v2496, %v2514
        %v2536 = vadd.f32 %v2497, %v2514
        %v2537 = vadd.f32 %v2498, %v2514
        %v2538 = vadd.f32 %v2499, %v2514
        %v2539 = vadd.f32 %v2500, %v2514
        %v2540 = vadd.f32 %v2501, %v2514
        %v2541 = vadd.f32 %v2502, %v2514
        %v2542 = vadd.f32 %v2503, %v2514
        %v2543 = vadd.f32 %v2504, %v2514
        %v2544 = vadd.f32 %v2505, %v2514
        %v2545 = vadd.f32 %v2506, %v2514
        %v2546 = vadd.f32 %v2507, %v2514
        %v2547 = vadd.f32 %v2508, %v2514
        %v2548 = vadd.f32 %v2516, %v2517
        %v2549 = vadd.f32 %v2548, %v2518
        %v2550 = vadd.f32 %v2549, %v2519
        %v2551 = vrot.slane %v2550, 4
        %v2552 = vadd.f32 %v2550, %v2551
        %v2553 = vrot.slane %v2552, 2
        %v2554 = vadd.f32 %v2552, %v2553
        %v2555 = vrot.slane %v2554, 1
        %v2556 = vadd.f32 %v2554, %v2555
        %v2557 = vadd.f32 %v2520, %v2521
        %v2558 = vadd.f32 %v2557, %v2522
        %v2559 = vadd.f32 %v2558, %v2523
        %v2560 = vrot.slane %v2559, 4
        %v2561 = vadd.f32 %v2559, %v2560
        %v2562 = vrot.slane %v2561, 2
        %v2563 = vadd.f32 %v2561, %v2562
        %v2564 = vrot.slane %v2563, 1
        %v2565 = vadd.f32 %v2563, %v2564
        %v2566 = vadd.f32 %v2524, %v2525
        %v2567 = vadd.f32 %v2566, %v2526
        %v2568 = vadd.f32 %v2567, %v2527
        %v2569 = vrot.slane %v2568, 4
        %v2570 = vadd.f32 %v2568, %v2569
        %v2571 = vrot.slane %v2570, 2
        %v2572 = vadd.f32 %v2570, %v2571
        %v2573 = vrot.slane %v2572, 1
        %v2574 = vadd.f32 %v2572, %v2573
        %v2575 = vadd.f32 %v2528, %v2529
        %v2576 = vadd.f32 %v2575, %v2530
        %v2577 = vadd.f32 %v2576, %v2531
        %v2578 = vrot.slane %v2577, 4
        %v2579 = vadd.f32 %v2577, %v2578
        %v2580 = vrot.slane %v2579, 2
        %v2581 = vadd.f32 %v2579, %v2580
        %v2582 = vrot.slane %v2581, 1
        %v2583 = vadd.f32 %v2581, %v2582
        %v2584 = vadd.f32 %v2532, %v2533
        %v2585 = vadd.f32 %v2584, %v2534
        %v2586 = vadd.f32 %v2585, %v2535
        %v2587 = vrot.slane %v2586, 4
        %v2588 = vadd.f32 %v2586, %v2587
        %v2589 = vrot.slane %v2588, 2
        %v2590 = vadd.f32 %v2588, %v2589
        %v2591 = vrot.slane %v2590, 1
        %v2592 = vadd.f32 %v2590, %v2591
        %v2593 = vadd.f32 %v2536, %v2537
        %v2594 = vadd.f32 %v2593, %v2538
        %v2595 = vadd.f32 %v2594, %v2539
        %v2596 = vrot.slane %v2595, 4
        %v2597 = vadd.f32 %v2595, %v2596
        %v2598 = vrot.slane %v2597, 2
        %v2599 = vadd.f32 %v2597, %v2598
        %v2600 = vrot.slane %v2599, 1
        %v2601 = vadd.f32 %v2599, %v2600
        %v2602 = vadd.f32 %v2540, %v2541
        %v2603 = vadd.f32 %v2602, %v2542
        %v2604 = vadd.f32 %v2603, %v2543
        %v2605 = vrot.slane %v2604, 4
        %v2606 = vadd.f32 %v2604, %v2605
        %v2607 = vrot.slane %v2606, 2
        %v2608 = vadd.f32 %v2606, %v2607
        %v2609 = vrot.slane %v2608, 1
        %v2610 = vadd.f32 %v2608, %v2609
        %v2611 = vadd.f32 %v2544, %v2545
        %v2612 = vadd.f32 %v2611, %v2546
        %v2613 = vadd.f32 %v2612, %v2547
        %v2614 = vrot.slane %v2613, 4
        %v2615 = vadd.f32 %v2613, %v2614
        %v2616 = vrot.slane %v2615, 2
        %v2617 = vadd.f32 %v2615, %v2616
        %v2618 = vrot.slane %v2617, 1
        %v2619 = vadd.f32 %v2617, %v2618
        %v2620 = vrcp.pop 32.0
        %v2621 = vmul.f32 %v2556, %v2620
        %v2622 = vmul.f32 %v2565, %v2620
        %v2623 = vmul.f32 %v2574, %v2620
        %v2624 = vmul.f32 %v2583, %v2620
        %v2625 = vmul.f32 %v2592, %v2620
        %v2626 = vmul.f32 %v2601, %v2620
        %v2627 = vmul.f32 %v2610, %v2620
        %v2628 = vmul.f32 %v2619, %v2620
        %v2629 = vpack.c.bf16 %v2621, %v2621
        %v2630 = vpack.c.bf16 %v2622, %v2622
        %v2631 = vpack.c.bf16 %v2623, %v2623
        %v2632 = vpack.c.bf16 %v2624, %v2624
        %v2633 = vpack.c.bf16 %v2625, %v2625
        %v2634 = vpack.c.bf16 %v2626, %v2626
        %v2635 = vpack.c.bf16 %v2627, %v2627
        %v2636 = vpack.c.bf16 %v2628, %v2628
        %v2637 = vld [vmem:[%s9] sm:$0xf]
        %v2638 = vld [vmem:[%s9 + $0x4] sm:$0xf]
        %v2639 = vld [vmem:[%s9 + $0x8] sm:$0xf]
        %v2640 = vld [vmem:[%s9 + $0xc] sm:$0xf]
        %v2641 = vld [vmem:[%s9 + $0x10] sm:$0xf]
        %v2642 = vld [vmem:[%s9 + $0x14] sm:$0xf]
        %v2643 = vld [vmem:[%s9 + $0x18] sm:$0xf]
        %v2644 = vld [vmem:[%s9 + $0x1c] sm:$0xf]
        %v2645 = vld [vmem:[%s9 + $0x20] sm:$0xf]
        %v2646 = vld [vmem:[%s9 + $0x24] sm:$0xf]
        %v2647 = vld [vmem:[%s9 + $0x28] sm:$0xf]
        %v2648 = vld [vmem:[%s9 + $0x2c] sm:$0xf]
        %v2649 = vld [vmem:[%s9 + $0x30] sm:$0xf]
        %v2650 = vld [vmem:[%s9 + $0x34] sm:$0xf]
        %v2651 = vld [vmem:[%s9 + $0x38] sm:$0xf]
        %v2652 = vld [vmem:[%s9 + $0x3c] sm:$0xf]
        %v2661 = vunpack.c.l.b16 %v2629
        %v2662 = vunpack.c.l.b16 %v2630
        %v2663 = vunpack.c.l.b16 %v2631
        %v2664 = vunpack.c.l.b16 %v2632
        %v2665 = vunpack.c.l.b16 %v2633
        %v2666 = vunpack.c.l.b16 %v2634
        %v2667 = vunpack.c.l.b16 %v2635
        %v2668 = vunpack.c.l.b16 %v2636
        %vm2669 = vcmask 1041409
        %v2670 = vsel %vm2669, %v2662, %v2661
        %vm2671 = vcmask 1042434
        %v2672 = vsel %vm2671, %v2663, %v2670
        %vm2673 = vcmask 1043459
        %v2674 = vsel %vm2673, %v2664, %v2672
        %vm2675 = vcmask 1044484
        %v2676 = vsel %vm2675, %v2665, %v2674
        %vm2677 = vcmask 1045509
        %v2678 = vsel %vm2677, %v2666, %v2676
        %vm2679 = vcmask 1046534
        %v2680 = vsel %vm2679, %v2667, %v2678
        %vm2681 = vcmask 1047559
        %v2682 = vsel %vm2681, %v2668, %v2680
        %v2683 = vpack.c.b16 %v2682, %v2682
        %v2701 = vunpack.c.l.b16 %v2637
        %v2702 = vunpack.c.l.b16 %v2638
        %v2703 = vunpack.c.l.b16 %v2639
        %v2704 = vunpack.c.l.b16 %v2640
        %v2705 = vunpack.c.l.b16 %v2641
        %v2706 = vunpack.c.l.b16 %v2642
        %v2707 = vunpack.c.l.b16 %v2643
        %v2708 = vunpack.c.l.b16 %v2644
        %v2709 = vunpack.c.l.b16 %v2645
        %v2710 = vunpack.c.l.b16 %v2646
        %v2711 = vunpack.c.l.b16 %v2647
        %v2712 = vunpack.c.l.b16 %v2648
        %v2713 = vunpack.c.l.b16 %v2649
        %v2714 = vunpack.c.l.b16 %v2650
        %v2715 = vunpack.c.l.b16 %v2651
        %v2716 = vunpack.c.l.b16 %v2652
        %v2717 = vpack.c.b16 %v2702, %v2701
        %v2718 = vpack.c.b16 %v2704, %v2703
        %v2719 = vpack.c.b16 %v2706, %v2705
        %v2720 = vpack.c.b16 %v2708, %v2707
        %v2721 = vpack.c.b16 %v2710, %v2709
        %v2722 = vpack.c.b16 %v2712, %v2711
        %v2723 = vpack.c.b16 %v2714, %v2713
        %v2724 = vpack.c.b16 %v2716, %v2715
        %2733 = vmatprep.subr.bf16.mxu0 0
        %2734 = vmatpush1.bf16.msra.mxu0 %v2724
        %2735 = vmatprep.subr.bf16.mxu0 0
        %2736 = vmatpush1.bf16.msra.mxu0 %v2723
        %2737 = vmatprep.subr.bf16.mxu0 0
        %2738 = vmatpush1.bf16.msra.mxu0 %v2722
        %2739 = vmatprep.subr.bf16.mxu0 0
        %2740 = vmatpush1.bf16.msra.mxu0 %v2721
        %2741 = vmatprep.subr.bf16.mxu0 0
        %2742 = vmatpush1.bf16.msra.mxu0 %v2720
        %2743 = vmatprep.subr.bf16.mxu0 0
        %2744 = vmatpush1.bf16.msra.mxu0 %v2719
        %2745 = vmatprep.subr.bf16.mxu0 0
        %2746 = vmatpush1.bf16.msra.mxu0 %v2718
        %2747 = vmatprep.subr.bf16.mxu0 0
        %2748 = vmatpush1.bf16.msra.mxu0 %v2717
        %2749 = vmatprep.subr.bf16.mxu0 0
        %2750 = vmatpush2.bf16.msra.mxu0 0
        %2751 = vmatprep.subr.bf16.mxu0 0
        %2752 = vmatpush2.bf16.msra.mxu0 0
        %2753 = vmatprep.subr.bf16.mxu0 0
        %2754 = vmatpush2.bf16.msra.mxu0 0
        %2755 = vmatprep.subr.bf16.mxu0 0
        %2756 = vmatpush2.bf16.msra.mxu0 0
        %2757 = vmatprep.subr.bf16.mxu0 0
        %2758 = vmatpush2.bf16.msra.mxu0 0
        %2759 = vmatprep.subr.bf16.mxu0 0
        %2760 = vmatpush2.bf16.msra.mxu0 0
        %2761 = vmatprep.subr.bf16.mxu0 0
        %2762 = vmatpush2.bf16.msra.mxu0 0
        %2763 = vmatprep.subr.bf16.mxu0 0
        %2764 = vmatpush2.bf16.msra.mxu0 0
        %2765 = vmatprep.mubr.bf16.mxu0 0
        %2766 = vmatmul.mubr.bf16.gmra.mxu0 %v2683
        %v2767 = vpop.f32.mrf.mxu0
        %v2768 = vadd.f32 0.0, %v2767
        %v2769 = vpop.f32.mrf.mxu0
        %v2770 = vpop.f32.mrf.mxu0
        %v2771 = vpop.f32.mrf.mxu0
        %2772 = vdwg.mxu0
        %2773 = vst [vmem:[%s368] sm:$0xff] %v2768
        %v2774 = vld [vmem:[%s379] sm:$0xff]
        %2775 = vst [vmem:[%s368 + $0x8] sm:$0xff] %v2774
        %s2776 = sand.u32 %s252, 1
        %s2777 = scalar_lea.sflag [#allocation3], %s2776
        %s2778 = sand.u32 %s252, 1
        %s2779 = smul.addr %s2778, 16
        %s2780 = scalar_lea.vmem [#allocation2], %s2779
        // Predicated region
        $region61: #{tpu_custom_call.1} parent=59 // pred_check
          %p2781 = pneg %p262
        $region62: #{tpu_custom_call.1} parent=59 // pred_check_branch
          %2783 = sbr.rel (%p2781) target = $region64
        $region63: #{tpu_custom_call.1} parent=59 // pred_region
          %s2785 = ssub.s32 256, 256
          %2786 = vsyncadd %s2777, %s2785
          %s2787 = smul.addr %s24, 2
          %s2788 = smul.addr %s2787, 128
          %s2789 = scalar_lea.hbm %s10, %s2788
          %s2791 = sshll.u32 %s2780, 4
          %s2792 = int_to_ptr.vmem [resolvable:$true] %s2791
          %2794 = dma.vmem_to_hbm [thread:$0]  %s2792, 256, %s2789, %s2777
        $region64: #{tpu_custom_call.1} parent=59 // pred_fallthru
          _
      $region60: #{tpu_custom_call.1} parent=5 // pred_fallthru
        _
      %p2795 = scmp.le.s32.totalorder 2, %s19
      // Predicated region
      $region65: #{tpu_custom_call.1} parent=5 // pred_check
        %p2796 = pneg %p2795
      $region66: #{tpu_custom_call.1} parent=5 // pred_check_branch
        %2798 = sbr.rel (%p2796) target = $region68
      $region67: #{tpu_custom_call.1} parent=5 // pred_region
        %s2799 = ssub.s32 %s19, 2
        // Predicated region
        $region69: #{tpu_custom_call.1} parent=67 // pred_check
          %p2800 = pneg %p268
        $region70: #{tpu_custom_call.1} parent=67 // pred_check_branch
          %2802 = sbr.rel (%p2800) target = $region72
        $region71: #{tpu_custom_call.1} parent=67 // pred_region
          %s2803 = sand.u32 %s253, 1
          %s2804 = scalar_lea.sflag [#allocation3], %s2803
          %s2805 = sand.u32 %s253, 1
          %s2806 = smul.addr %s2805, 16
          %s2807 = scalar_lea.vmem [#allocation2], %s2806
          %2808 = dma.done %s2804, 256
        $region72: #{tpu_custom_call.1} parent=67 // pred_fallthru
          _
      $region68: #{tpu_custom_call.1} parent=5 // pred_fallthru
        _
    $region6: #{tpu_custom_call.1} parent=1 // loop_footer
      %s23 = sadd.s32 1, %s19
    $region7: #{tpu_custom_call.1} parent=1 // loop_footer_branch
      %18 = sbr.rel target = $region3
    $region8: #{tpu_custom_call.1} parent=1 // loop_exit
      _
    %2809 = vsyncpa [#allocation3], 1
    %s2810 = scalar_lea.sflag [#allocation3], 1
    %2811 = vsyncpa %s2810, 1

</llo_original>
